<compile_context>
chip_gen: v7x
topology: tpu7x:2x2x1
jax: 0.10.0
libtpu: 0.0.40
codegen_flags: <defaults>
</compile_context>

<pallas_src>
import functools
import math

import jax
import jax.numpy as jnp
from jax.experimental import pallas as pl
from jax.experimental.pallas import tpu as pltpu


def _round_up(x, m):
    return (x + m - 1) // m * m


def _layer_norm(x, gamma, beta, eps):
    # Single-pass moments: sum(x) and sum(x*x) both read the same x, so the two
    # cross-lane reductions issue back-to-back (no serial mean->var dependency).
    inv_n = 1.0 / x.shape[-1]
    mean = jnp.sum(x, axis=-1, keepdims=True) * inv_n
    ex2 = jnp.sum(x * x, axis=-1, keepdims=True) * inv_n
    var = jnp.maximum(ex2 - mean * mean, 0.0)
    inv = jax.lax.rsqrt(var + eps)
    return (x - mean) * inv * gamma + beta


def output_kernel(hs_ref, inp_ref,
                  w1_ref, b1_ref, g1_ref, be1_ref,
                  w2_ref, b2_ref,
                  w3_ref, b3_ref, g3_ref, be3_ref,
                  out_ref, *, eps, approximate_gelu, compute_dtype):
    f32 = jnp.float32
    # Hoist bias / LN params once into f32 locals (no per-use re-broadcast).
    b1 = b1_ref[...].astype(f32)
    g1 = g1_ref[...].astype(f32)
    be1 = be1_ref[...].astype(f32)
    b2 = b2_ref[...].astype(f32)
    b3 = b3_ref[...].astype(f32)
    g3 = g3_ref[...].astype(f32)
    be3 = be3_ref[...].astype(f32)

    # hidden_states tile arrives as f32; cast to the MXU operand dtype in-register
    # (replaces the wrapper-side HBM cast pass).
    hs = hs_ref[...].astype(compute_dtype)
    inp = inp_ref[...].astype(f32)                 # residual stays f32

    # dense1: [rows, H] @ [H, H] -> f32 accumulation on the MXU; dropout1 = identity
    h = jnp.dot(hs, w1_ref[...], preferred_element_type=f32) + b1
    h = _layer_norm(h + inp, g1, be1, eps)

    # dense2: [rows, H] @ [H, 2H]
    h1 = jnp.dot(h.astype(w2_ref.dtype), w2_ref[...],
                 preferred_element_type=f32) + b2

    if approximate_gelu:
        # tanh approximation computed in the compute dtype: on v6e/v7x this rides the
        # bf16 EUP/VALU path (the binding slot at medium H).  Slight numerics change
        # vs exact GELU -- opt-in only.
        a = h1.astype(compute_dtype)
        c = jnp.asarray(0.7978845608028654, dtype=compute_dtype)   # sqrt(2/pi)
        k = jnp.asarray(0.044715, dtype=compute_dtype)
        half = jnp.asarray(0.5, dtype=compute_dtype)
        one = jnp.asarray(1.0, dtype=compute_dtype)
        h2 = (half * a * (one + jnp.tanh(c * (a + k * a * a * a)))).astype(w3_ref.dtype)
    else:
        # exact GELU (erf-based), matching transformers ACT2FN['gelu']; kept in f32.
        h2 = 0.5 * h1 * (1.0 + jax.lax.erf(h1 * (1.0 / math.sqrt(2.0))))
        h2 = h2.astype(w3_ref.dtype)

    # dense3: [rows, 2H] @ [2H, H]; dropout3 = identity
    h3 = jnp.dot(h2, w3_ref[...], preferred_element_type=f32) + b3
    out = _layer_norm(h3 + h, g3, be3, eps)
    out_ref[...] = out.astype(out_ref.dtype)


def _vmem_capacity_bytes():
    try:
        cap = int(pltpu.get_tpu_info().vmem_capacity_bytes)
    except Exception:
        cap = 64 * 1024 * 1024          # conservative (v7x per-core) if query fails
    return max(cap, 48 * 1024 * 1024)


def prepare_params(params, compute_dtype=jnp.bfloat16):
    """Cast the three matmul weights to the MXU compute dtype ONCE at setup time
    (per-call casting re-reads all f32 weights from HBM every forward).  Bias and
    LayerNorm params stay f32."""
    w1, b1, g1, be1, w2, b2, w3, b3, g3, be3 = params
    cast = lambda w: w.astype(compute_dtype)
    return (cast(w1), b1, g1, be1, cast(w2), b2, cast(w3), b3, g3, be3)


def output_forward(hidden_states, input_tensor, params, *, eps=1e-12,
                   compute_dtype=None, block_rows=None, approximate_gelu=False):
    """hidden_states, input_tensor: [B, S, H] float32.  `params` should come from
    prepare_params() so the weights are already in the MXU compute dtype (inferred
    from the weights when compute_dtype is None).  Returns [B, S, H] in the input
    dtype; matmuls run in compute_dtype with f32 accumulation."""
    B, S, H = hidden_states.shape
    rows = B * S
    out_dtype = hidden_states.dtype

    w1, b1, g1, be1, w2, b2, w3, b3, g3, be3 = params
    if compute_dtype is None:
        compute_dtype = w1.dtype
    # No-op when params were prepared with prepare_params(); fallback cast otherwise.
    w1c = w1 if w1.dtype == compute_dtype else w1.astype(compute_dtype)
    w2c = w2 if w2.dtype == compute_dtype else w2.astype(compute_dtype)
    w3c = w3 if w3.dtype == compute_dtype else w3.astype(compute_dtype)
    H2 = w2c.shape[1]
    w_isz = jnp.dtype(compute_dtype).itemsize

    # --- row tile: sublane-aligned (activation tiles stay f32 -> multiple of 8),
    #     sized so the grid has >= ~8 steps (fills the pipeline and feeds both v7x
    #     TensorCores), capped at 256 rows per step. ---
    if block_rows is None:
        block_rows = min(256, _round_up(pl.cdiv(rows, 8), 8))
    block_rows = max(8, _round_up(block_rows, 8))
    block_rows = min(block_rows, _round_up(rows, 8))
    grid = (pl.cdiv(rows, block_rows),)

    # Row-major flatten is a free metadata reshape; no cast / pad copies in HBM.
    # Ragged last block is handled by Pallas edge-block masking (all math is row-wise,
    # so garbage in padded rows never contaminates valid rows and is masked on store).
    hs2 = hidden_states.reshape(rows, H)
    in2 = input_tensor.reshape(rows, H)

    row_spec = pl.BlockSpec((block_rows, H), lambda i: (i, 0))

    def _const_spec(shape, single_buffer):
        idx = lambda i, _n=len(shape): (0,) * _n
        if single_buffer:
            try:
                # Constant index_map across the grid -> one VMEM copy is enough;
                # default double-buffering would just double weight VMEM.
                return pl.BlockSpec(shape, idx, pipeline_mode=pl.Buffered(1))
            except Exception:
                pass
        return pl.BlockSpec(shape, idx)

    # --- advisory cost estimate for the XLA scheduler ---
    flops = 2 * rows * (H * H + H * H2 + H2 * H)
    transcendentals = rows * H2                     # erf/tanh per GELU element
    bytes_accessed = (hs2.size * 4 + in2.size * 4
                      + rows * H * jnp.dtype(out_dtype).itemsize
                      + (w1c.size + w2c.size + w3c.size) * w_isz
                      + (b1.size + b2.size + b3.size
                         + g1.size + be1.size + g3.size + be3.size) * 4)
    cost = pl.CostEstimate(flops=flops, transcendentals=transcendentals,
                           bytes_accessed=bytes_accessed)

    vmem_cap = _vmem_capacity_bytes()
    kernel = functools.partial(output_kernel, eps=eps,
                               approximate_gelu=approximate_gelu,
                               compute_dtype=compute_dtype)

    def _build(single_buffer_weights):
        wbuf = 1 if single_buffer_weights else 2
        vmem_est = (3 * 2 * block_rows * H * 4                     # hs/inp/out tiles (dbl-buf)
                    + wbuf * (H * H + H * H2 + H2 * H) * w_isz     # resident weights
                    + 2 * block_rows * H2 * 4                      # h1 / h2 f32
                    + 4 * block_rows * H * 4)                      # h / h3 / out f32
        vmem_limit = int(min(max(2 * vmem_est, 32 * 1024 * 1024),
                             vmem_cap - 8 * 1024 * 1024))          # generation-aware cap
        return pl.pallas_call(
            kernel,
            out_shape=jax.ShapeDtypeStruct((rows, H), out_dtype),
            grid_spec=pltpu.PrefetchScalarGridSpec(
                num_scalar_prefetch=0,
                grid=grid,
                in_specs=[
                    row_spec,                                      # hidden_states (f32)
                    row_spec,                                      # input_tensor (f32)
                    _const_spec((H, H), single_buffer_weights),    # dense1 W
                    _const_spec((1, H), False),                    # dense1 b
                    _const_spec((1, H), False),                    # LN1 gamma
                    _const_spec((1, H), False),                    # LN1 beta
                    _const_spec((H, H2), single_buffer_weights),   # dense2 W
                    _const_spec((1, H2), False),                   # dense2 b
                    _const_spec((H2, H), single_buffer_weights),   # dense3 W
                    _const_spec((1, H), False),                    # dense3 b
                    _const_spec((1, H), False),                    # LN3 gamma
                    _const_spec((1, H), False),                    # LN3 beta
                ],
                out_specs=pl.BlockSpec((block_rows, H), lambda i: (i, 0)),
            ),
            compiler_params=pltpu.CompilerParams(
                dimension_semantics=("parallel",),
                vmem_limit_bytes=vmem_limit),
            cost_estimate=cost,
        )

    args = (hs2, in2, w1c, b1, g1, be1, w2c, b2, w3c, b3, g3, be3)
    try:
        out = _build(True)(*args)
    except Exception:
        # Fallback if this jax/Mosaic build rejects Buffered(1) single-buffering.
        out = _build(False)(*args)
    return out.reshape(B, S, H)


def init_params(key, H):
    """Deterministic synthetic parameters (PyTorch Linear weights pre-transposed to
    [in, out] so the kernel computes x @ W + b).  All f32; cast to the MXU compute
    dtype once via prepare_params()."""
    ks = jax.random.split(key, 6)
    H2 = 2 * H
    scale1 = 1.0 / math.sqrt(H)
    scale2 = 1.0 / math.sqrt(H2)
    w1 = jax.random.normal(ks[0], (H, H), jnp.float32) * scale1
    b1 = jax.random.normal(ks[1], (1, H), jnp.float32) * 0.01
    w2 = jax.random.normal(ks[2], (H, H2), jnp.float32) * scale1
    b2 = jax.random.normal(ks[3], (1, H2), jnp.float32) * 0.01
    w3 = jax.random.normal(ks[4], (H2, H), jnp.float32) * scale2
    b3 = jax.random.normal(ks[5], (1, H), jnp.float32) * 0.01
    g1 = jnp.ones((1, H), jnp.float32)
    be1 = jnp.zeros((1, H), jnp.float32)
    g3 = jnp.ones((1, H), jnp.float32)
    be3 = jnp.zeros((1, H), jnp.float32)
    return (w1, b1, g1, be1, w2, b2, w3, b3, g3, be3)


def _reference(hidden_states, input_tensor, params, eps=1e-12,
               compute_dtype=jnp.float32):
    """Pure-JAX reference mirroring the kernel's dtype strategy (rnd == identity when
    compute_dtype is f32, i.e. the exact PyTorch semantics)."""
    w1, b1, g1, be1, w2, b2, w3, b3, g3, be3 = params
    f32 = jnp.float32

    def rnd(x):
        return x.astype(compute_dtype).astype(f32)

    def ln(x, g, b):
        m = jnp.mean(x, -1, keepdims=True)
        v = jnp.mean((x - m) ** 2, -1, keepdims=True)
        return (x - m) / jnp.sqrt(v + eps) * g + b

    h = rnd(hidden_states) @ rnd(w1) + b1
    h = ln(h + input_tensor.astype(f32), g1, be1)
    h1 = rnd(h) @ rnd(w2) + b2
    h2 = jax.nn.gelu(h1, approximate=False)
    h3 = rnd(h2) @ rnd(w3) + b3
    return ln(h3 + h, g3, be3)


if __name__ == "__main__":
    key = jax.random.PRNGKey(0)
    (k_hs, k_in, k_p, k_hs2, k_in2, k_p2,
     k_hs3, k_in3, k_p3) = jax.random.split(key, 9)

    # --- test 1: module's small shapes, f32 compute path (exact semantics) ---
    B, S, H = 2, 8, 32
    hidden_states = jax.random.normal(k_hs, (B, S, H), jnp.float32)
    input_tensor = jax.random.normal(k_in, (B, S, H), jnp.float32)
    params = init_params(k_p, H)

    out = output_forward(hidden_states, input_tensor, params,
                         compute_dtype=jnp.float32)
    out = jax.block_until_ready(out)
    ref = _reference(hidden_states, input_tensor, params, compute_dtype=jnp.float32)
    assert out.shape == (B, S, H)
    err = float(jnp.max(jnp.abs(out - ref)))
    assert err < 1e-4, err

    # --- test 2: lane-dense H, multi-step parallel grid, bf16 MXU path with the
    #             weights pre-cast ONCE via prepare_params ---
    B2, S2, Hd = 2, 256, 128            # rows = 512 -> 8 row tiles of 64
    hs_big = jax.random.normal(k_hs2, (B2, S2, Hd), jnp.float32)
    in_big = jax.random.normal(k_in2, (B2, S2, Hd), jnp.float32)
    params_big = init_params(k_p2, Hd)
    params_bf16 = prepare_params(params_big, jnp.bfloat16)

    out_big = output_forward(hs_big, in_big, params_bf16)
    out_big = jax.block_until_ready(out_big)
    ref_big = _reference(hs_big, in_big, params_big, compute_dtype=jnp.bfloat16)
    assert out_big.shape == (B2, S2, Hd)
    err_big = float(jnp.max(jnp.abs(out_big - ref_big)))
    assert err_big < 1e-2, err_big

    # --- test 3: rows not divisible by the row tile -> exercises edge-block masking
    #             (replaces the old wrapper-side jnp.pad / output slice) ---
    B3, S3, H3 = 1, 13, 128
    hs_odd = jax.random.normal(k_hs3, (B3, S3, H3), jnp.float32)
    in_odd = jax.random.normal(k_in3, (B3, S3, H3), jnp.float32)
    params_odd = init_params(k_p3, H3)
    out_odd = output_forward(hs_odd, in_odd, params_odd, compute_dtype=jnp.float32)
    out_odd = jax.block_until_ready(out_odd)
    ref_odd = _reference(hs_odd, in_odd, params_odd, compute_dtype=jnp.float32)
    assert out_odd.shape == (B3, S3, H3)
    err_odd = float(jnp.max(jnp.abs(out_odd - ref_odd)))
    assert err_odd < 1e-4, err_odd

    print("KERNEL_OK")
</pallas_src>

<mosaic_0001>
module attributes {stable_mosaic.version = 11 : i64} {
  func.func @output_kernel(%arg0: i32, %arg1: memref<8x32xf32, #tpu.memory_space<vmem>>, %arg2: memref<8x32xf32, #tpu.memory_space<vmem>>, %arg3: memref<32x32xf32, #tpu.memory_space<vmem>>, %arg4: memref<1x32xf32, #tpu.memory_space<vmem>>, %arg5: memref<1x32xf32, #tpu.memory_space<vmem>>, %arg6: memref<1x32xf32, #tpu.memory_space<vmem>>, %arg7: memref<32x64xf32, #tpu.memory_space<vmem>>, %arg8: memref<1x64xf32, #tpu.memory_space<vmem>>, %arg9: memref<64x32xf32, #tpu.memory_space<vmem>>, %arg10: memref<1x32xf32, #tpu.memory_space<vmem>>, %arg11: memref<1x32xf32, #tpu.memory_space<vmem>>, %arg12: memref<1x32xf32, #tpu.memory_space<vmem>>, %arg13: memref<8x32xf32, #tpu.memory_space<vmem>>) attributes {dimension_semantics = [#tpu.dimension_semantics<parallel>], iteration_bounds = array<i64: 2>, scalar_prefetch = 0 : i64, scratch_operands = 0 : i64, tpu.core_type = #tpu.core_type<tc>, window_params = [{transform_indices = @transform_0, window_bounds = array<i64: 8, 32>}, {transform_indices = @transform_1, window_bounds = array<i64: 8, 32>}, {pipeline_mode = #tpu.pipeline_mode<synchronous>, transform_indices = @transform_2, window_bounds = array<i64: 32, 32>}, {pipeline_mode = #tpu.pipeline_mode<synchronous>, transform_indices = @transform_3, window_bounds = array<i64: 1, 32>}, {pipeline_mode = #tpu.pipeline_mode<synchronous>, transform_indices = @transform_4, window_bounds = array<i64: 1, 32>}, {pipeline_mode = #tpu.pipeline_mode<synchronous>, transform_indices = @transform_5, window_bounds = array<i64: 1, 32>}, {pipeline_mode = #tpu.pipeline_mode<synchronous>, transform_indices = @transform_6, window_bounds = array<i64: 32, 64>}, {pipeline_mode = #tpu.pipeline_mode<synchronous>, transform_indices = @transform_7, window_bounds = array<i64: 1, 64>}, {pipeline_mode = #tpu.pipeline_mode<synchronous>, transform_indices = @transform_8, window_bounds = array<i64: 64, 32>}, {pipeline_mode = #tpu.pipeline_mode<synchronous>, transform_indices = @transform_9, window_bounds = array<i64: 1, 32>}, {pipeline_mode = #tpu.pipeline_mode<synchronous>, transform_indices = @transform_10, window_bounds = array<i64: 1, 32>}, {pipeline_mode = #tpu.pipeline_mode<synchronous>, transform_indices = @transform_11, window_bounds = array<i64: 1, 32>}, {transform_indices = @transform_12, window_bounds = array<i64: 8, 32>}]} {
    %c0 = arith.constant 0 : index
    %c0_0 = arith.constant 0 : index
    %0 = vector.load %arg4[%c0, %c0_0] : memref<1x32xf32, #tpu.memory_space<vmem>>, vector<1x32xf32>
    %c0_1 = arith.constant 0 : index
    %c0_2 = arith.constant 0 : index
    %1 = vector.load %arg5[%c0_1, %c0_2] : memref<1x32xf32, #tpu.memory_space<vmem>>, vector<1x32xf32>
    %c0_3 = arith.constant 0 : index
    %c0_4 = arith.constant 0 : index
    %2 = vector.load %arg6[%c0_3, %c0_4] : memref<1x32xf32, #tpu.memory_space<vmem>>, vector<1x32xf32>
    %c0_5 = arith.constant 0 : index
    %c0_6 = arith.constant 0 : index
    %3 = vector.load %arg8[%c0_5, %c0_6] : memref<1x64xf32, #tpu.memory_space<vmem>>, vector<1x64xf32>
    %c0_7 = arith.constant 0 : index
    %c0_8 = arith.constant 0 : index
    %4 = vector.load %arg10[%c0_7, %c0_8] : memref<1x32xf32, #tpu.memory_space<vmem>>, vector<1x32xf32>
    %c0_9 = arith.constant 0 : index
    %c0_10 = arith.constant 0 : index
    %5 = vector.load %arg11[%c0_9, %c0_10] : memref<1x32xf32, #tpu.memory_space<vmem>>, vector<1x32xf32>
    %c0_11 = arith.constant 0 : index
    %c0_12 = arith.constant 0 : index
    %6 = vector.load %arg12[%c0_11, %c0_12] : memref<1x32xf32, #tpu.memory_space<vmem>>, vector<1x32xf32>
    %c0_13 = arith.constant 0 : index
    %c0_14 = arith.constant 0 : index
    %7 = vector.load %arg1[%c0_13, %c0_14] : memref<8x32xf32, #tpu.memory_space<vmem>>, vector<8x32xf32>
    %c0_15 = arith.constant 0 : index
    %c0_16 = arith.constant 0 : index
    %8 = vector.load %arg2[%c0_15, %c0_16] : memref<8x32xf32, #tpu.memory_space<vmem>>, vector<8x32xf32>
    %c0_17 = arith.constant 0 : index
    %c0_18 = arith.constant 0 : index
    %9 = vector.load %arg3[%c0_17, %c0_18] : memref<32x32xf32, #tpu.memory_space<vmem>>, vector<32x32xf32>
    %cst = arith.constant dense<0.000000e+00> : vector<8x32xf32>
    %10 = tpu.matmul %7, %9, %cst {dimension_numbers = #tpu.dot_dimension_numbers<[1], [0], [0], [1], [0, 0, 1, 1], [], []>} : vector<8x32xf32>, vector<32x32xf32>, vector<8x32xf32> -> vector<8x32xf32>
    %11 = vector.broadcast %0 : vector<1x32xf32> to vector<8x32xf32>
    %12 = arith.addf %10, %11 : vector<8x32xf32>
    %13 = arith.addf %12, %8 : vector<8x32xf32>
    %cst_19 = arith.constant dense<0.000000e+00> : vector<8xf32>
    %14 = vector.multi_reduction <add>, %13, %cst_19 [1] : vector<8x32xf32> to vector<8xf32>
    %15 = vector.shape_cast %14 : vector<8xf32> to vector<8x1xf32>
    %cst_20 = arith.constant 3.125000e-02 : f32
    %16 = vector.broadcast %cst_20 : f32 to vector<8x1xf32>
    %17 = arith.mulf %15, %16 : vector<8x1xf32>
    %18 = arith.mulf %13, %13 : vector<8x32xf32>
    %cst_21 = arith.constant dense<0.000000e+00> : vector<8xf32>
    %19 = vector.multi_reduction <add>, %18, %cst_21 [1] : vector<8x32xf32> to vector<8xf32>
    %20 = vector.shape_cast %19 : vector<8xf32> to vector<8x1xf32>
    %cst_22 = arith.constant 3.125000e-02 : f32
    %21 = vector.broadcast %cst_22 : f32 to vector<8x1xf32>
    %22 = arith.mulf %20, %21 : vector<8x1xf32>
    %23 = arith.mulf %17, %17 : vector<8x1xf32>
    %24 = arith.subf %22, %23 : vector<8x1xf32>
    %cst_23 = arith.constant 0.000000e+00 : f32
    %25 = vector.broadcast %cst_23 : f32 to vector<8x1xf32>
    %26 = arith.maximumf %24, %25 : vector<8x1xf32>
    %cst_24 = arith.constant 9.99999996E-13 : f32
    %27 = vector.broadcast %cst_24 : f32 to vector<8x1xf32>
    %28 = arith.addf %26, %27 : vector<8x1xf32>
    %29 = math.rsqrt %28 : vector<8x1xf32>
    %30 = vector.broadcast %17 : vector<8x1xf32> to vector<8x32xf32>
    %31 = arith.subf %13, %30 : vector<8x32xf32>
    %32 = vector.broadcast %29 : vector<8x1xf32> to vector<8x32xf32>
    %33 = arith.mulf %31, %32 : vector<8x32xf32>
    %34 = vector.broadcast %1 : vector<1x32xf32> to vector<8x32xf32>
    %35 = arith.mulf %33, %34 : vector<8x32xf32>
    %36 = vector.broadcast %2 : vector<1x32xf32> to vector<8x32xf32>
    %37 = arith.addf %35, %36 : vector<8x32xf32>
    %c0_25 = arith.constant 0 : index
    %c0_26 = arith.constant 0 : index
    %38 = vector.load %arg7[%c0_25, %c0_26] : memref<32x64xf32, #tpu.memory_space<vmem>>, vector<32x64xf32>
    %cst_27 = arith.constant dense<0.000000e+00> : vector<8x64xf32>
    %39 = tpu.matmul %37, %38, %cst_27 {dimension_numbers = #tpu.dot_dimension_numbers<[1], [0], [0], [1], [0, 0, 1, 1], [], []>} : vector<8x32xf32>, vector<32x64xf32>, vector<8x64xf32> -> vector<8x64xf32>
    %40 = vector.broadcast %3 : vector<1x64xf32> to vector<8x64xf32>
    %41 = arith.addf %39, %40 : vector<8x64xf32>
    %cst_28 = arith.constant 5.000000e-01 : f32
    %42 = vector.broadcast %cst_28 : f32 to vector<8x64xf32>
    %43 = arith.mulf %42, %41 : vector<8x64xf32>
    %cst_29 = arith.constant 0.707106769 : f32
    %44 = vector.broadcast %cst_29 : f32 to vector<8x64xf32>
    %45 = arith.mulf %41, %44 : vector<8x64xf32>
    %46 = math.erf %45 : vector<8x64xf32>
    %cst_30 = arith.constant 1.000000e+00 : f32
    %47 = vector.broadcast %cst_30 : f32 to vector<8x64xf32>
    %48 = arith.addf %47, %46 : vector<8x64xf32>
    %49 = arith.mulf %43, %48 : vector<8x64xf32>
    %c0_31 = arith.constant 0 : index
    %c0_32 = arith.constant 0 : index
    %50 = vector.load %arg9[%c0_31, %c0_32] : memref<64x32xf32, #tpu.memory_space<vmem>>, vector<64x32xf32>
    %cst_33 = arith.constant dense<0.000000e+00> : vector<8x32xf32>
    %51 = tpu.matmul %49, %50, %cst_33 {dimension_numbers = #tpu.dot_dimension_numbers<[1], [0], [0], [1], [0, 0, 1, 1], [], []>} : vector<8x64xf32>, vector<64x32xf32>, vector<8x32xf32> -> vector<8x32xf32>
    %52 = vector.broadcast %4 : vector<1x32xf32> to vector<8x32xf32>
    %53 = arith.addf %51, %52 : vector<8x32xf32>
    %54 = arith.addf %53, %37 : vector<8x32xf32>
    %cst_34 = arith.constant dense<0.000000e+00> : vector<8xf32>
    %55 = vector.multi_reduction <add>, %54, %cst_34 [1] : vector<8x32xf32> to vector<8xf32>
    %56 = vector.shape_cast %55 : vector<8xf32> to vector<8x1xf32>
    %cst_35 = arith.constant 3.125000e-02 : f32
    %57 = vector.broadcast %cst_35 : f32 to vector<8x1xf32>
    %58 = arith.mulf %56, %57 : vector<8x1xf32>
    %59 = arith.mulf %54, %54 : vector<8x32xf32>
    %cst_36 = arith.constant dense<0.000000e+00> : vector<8xf32>
    %60 = vector.multi_reduction <add>, %59, %cst_36 [1] : vector<8x32xf32> to vector<8xf32>
    %61 = vector.shape_cast %60 : vector<8xf32> to vector<8x1xf32>
    %cst_37 = arith.constant 3.125000e-02 : f32
    %62 = vector.broadcast %cst_37 : f32 to vector<8x1xf32>
    %63 = arith.mulf %61, %62 : vector<8x1xf32>
    %64 = arith.mulf %58, %58 : vector<8x1xf32>
    %65 = arith.subf %63, %64 : vector<8x1xf32>
    %cst_38 = arith.constant 0.000000e+00 : f32
    %66 = vector.broadcast %cst_38 : f32 to vector<8x1xf32>
    %67 = arith.maximumf %65, %66 : vector<8x1xf32>
    %cst_39 = arith.constant 9.99999996E-13 : f32
    %68 = vector.broadcast %cst_39 : f32 to vector<8x1xf32>
    %69 = arith.addf %67, %68 : vector<8x1xf32>
    %70 = math.rsqrt %69 : vector<8x1xf32>
    %71 = vector.broadcast %58 : vector<8x1xf32> to vector<8x32xf32>
    %72 = arith.subf %54, %71 : vector<8x32xf32>
    %73 = vector.broadcast %70 : vector<8x1xf32> to vector<8x32xf32>
    %74 = arith.mulf %72, %73 : vector<8x32xf32>
    %75 = vector.broadcast %5 : vector<1x32xf32> to vector<8x32xf32>
    %76 = arith.mulf %74, %75 : vector<8x32xf32>
    %77 = vector.broadcast %6 : vector<1x32xf32> to vector<8x32xf32>
    %78 = arith.addf %76, %77 : vector<8x32xf32>
    %c0_40 = arith.constant 0 : index
    %c0_41 = arith.constant 0 : index
    %79 = vector.load %arg13[%c0_40, %c0_41] : memref<8x32xf32, #tpu.memory_space<vmem>>, vector<8x32xf32>
    tpu.vector_store %arg13[%c0_40, %c0_41], %78 {strides = array<i32>} : memref<8x32xf32, #tpu.memory_space<vmem>>, vector<8x32xf32>,
    return
  }
  func.func @transform_0(%arg0: i32) -> (i32, i32) {
    %c0_i32 = arith.constant 0 : i32
    %c0_i32_0 = arith.constant 0 : i32
    return %arg0, %c0_i32 : i32, i32
  }
  func.func @transform_1(%arg0: i32) -> (i32, i32) {
    %c0_i32 = arith.constant 0 : i32
    %c0_i32_0 = arith.constant 0 : i32
    return %arg0, %c0_i32 : i32, i32
  }
  func.func @transform_2(%arg0: i32) -> (i32, i32) {
    %c0_i32 = arith.constant 0 : i32
    %c0_i32_0 = arith.constant 0 : i32
    %c0_i32_1 = arith.constant 0 : i32
    return %c0_i32, %c0_i32_0 : i32, i32
  }
  func.func @transform_3(%arg0: i32) -> (i32, i32) {
    %c0_i32 = arith.constant 0 : i32
    %c0_i32_0 = arith.constant 0 : i32
    %c0_i32_1 = arith.constant 0 : i32
    return %c0_i32, %c0_i32_0 : i32, i32
  }
  func.func @transform_4(%arg0: i32) -> (i32, i32) {
    %c0_i32 = arith.constant 0 : i32
    %c0_i32_0 = arith.constant 0 : i32
    %c0_i32_1 = arith.constant 0 : i32
    return %c0_i32, %c0_i32_0 : i32, i32
  }
  func.func @transform_5(%arg0: i32) -> (i32, i32) {
    %c0_i32 = arith.constant 0 : i32
    %c0_i32_0 = arith.constant 0 : i32
    %c0_i32_1 = arith.constant 0 : i32
    return %c0_i32, %c0_i32_0 : i32, i32
  }
  func.func @transform_6(%arg0: i32) -> (i32, i32) {
    %c0_i32 = arith.constant 0 : i32
    %c0_i32_0 = arith.constant 0 : i32
    %c0_i32_1 = arith.constant 0 : i32
    return %c0_i32, %c0_i32_0 : i32, i32
  }
  func.func @transform_7(%arg0: i32) -> (i32, i32) {
    %c0_i32 = arith.constant 0 : i32
    %c0_i32_0 = arith.constant 0 : i32
    %c0_i32_1 = arith.constant 0 : i32
    return %c0_i32, %c0_i32_0 : i32, i32
  }
  func.func @transform_8(%arg0: i32) -> (i32, i32) {
    %c0_i32 = arith.constant 0 : i32
    %c0_i32_0 = arith.constant 0 : i32
    %c0_i32_1 = arith.constant 0 : i32
    return %c0_i32, %c0_i32_0 : i32, i32
  }
  func.func @transform_9(%arg0: i32) -> (i32, i32) {
    %c0_i32 = arith.constant 0 : i32
    %c0_i32_0 = arith.constant 0 : i32
    %c0_i32_1 = arith.constant 0 : i32
    return %c0_i32, %c0_i32_0 : i32, i32
  }
  func.func @transform_10(%arg0: i32) -> (i32, i32) {
    %c0_i32 = arith.constant 0 : i32
    %c0_i32_0 = arith.constant 0 : i32
    %c0_i32_1 = arith.constant 0 : i32
    return %c0_i32, %c0_i32_0 : i32, i32
  }
  func.func @transform_11(%arg0: i32) -> (i32, i32) {
    %c0_i32 = arith.constant 0 : i32
    %c0_i32_0 = arith.constant 0 : i32
    %c0_i32_1 = arith.constant 0 : i32
    return %c0_i32, %c0_i32_0 : i32, i32
  }
  func.func @transform_12(%arg0: i32) -> (i32, i32) {
    %c0_i32 = arith.constant 0 : i32
    %c0_i32_0 = arith.constant 0 : i32
    return %arg0, %c0_i32 : i32, i32
  }
}

module attributes {stable_mosaic.version = 11 : i64} {
  func.func @output_kernel(%arg0: i32, %arg1: memref<8x32xf32, #tpu.memory_space<vmem>>, %arg2: memref<8x32xf32, #tpu.memory_space<vmem>>, %arg3: memref<32x32xf32, #tpu.memory_space<vmem>>, %arg4: memref<1x32xf32, #tpu.memory_space<vmem>>, %arg5: memref<1x32xf32, #tpu.memory_space<vmem>>, %arg6: memref<1x32xf32, #tpu.memory_space<vmem>>, %arg7: memref<32x64xf32, #tpu.memory_space<vmem>>, %arg8: memref<1x64xf32, #tpu.memory_space<vmem>>, %arg9: memref<64x32xf32, #tpu.memory_space<vmem>>, %arg10: memref<1x32xf32, #tpu.memory_space<vmem>>, %arg11: memref<1x32xf32, #tpu.memory_space<vmem>>, %arg12: memref<1x32xf32, #tpu.memory_space<vmem>>, %arg13: memref<8x32xf32, #tpu.memory_space<vmem>>) attributes {dimension_semantics = [#tpu.dimension_semantics<parallel>], iteration_bounds = array<i64: 2>, scalar_prefetch = 0 : i64, scratch_operands = 0 : i64, tpu.core_type = #tpu.core_type<tc>, window_params = [{transform_indices = @transform_0, window_bounds = array<i64: 8, 32>}, {transform_indices = @transform_1, window_bounds = array<i64: 8, 32>}, {pipeline_mode = #tpu.pipeline_mode<synchronous>, transform_indices = @transform_2, window_bounds = array<i64: 32, 32>}, {pipeline_mode = #tpu.pipeline_mode<synchronous>, transform_indices = @transform_3, window_bounds = array<i64: 1, 32>}, {pipeline_mode = #tpu.pipeline_mode<synchronous>, transform_indices = @transform_4, window_bounds = array<i64: 1, 32>}, {pipeline_mode = #tpu.pipeline_mode<synchronous>, transform_indices = @transform_5, window_bounds = array<i64: 1, 32>}, {pipeline_mode = #tpu.pipeline_mode<synchronous>, transform_indices = @transform_6, window_bounds = array<i64: 32, 64>}, {pipeline_mode = #tpu.pipeline_mode<synchronous>, transform_indices = @transform_7, window_bounds = array<i64: 1, 64>}, {pipeline_mode = #tpu.pipeline_mode<synchronous>, transform_indices = @transform_8, window_bounds = array<i64: 64, 32>}, {pipeline_mode = #tpu.pipeline_mode<synchronous>, transform_indices = @transform_9, window_bounds = array<i64: 1, 32>}, {pipeline_mode = #tpu.pipeline_mode<synchronous>, transform_indices = @transform_10, window_bounds = array<i64: 1, 32>}, {pipeline_mode = #tpu.pipeline_mode<synchronous>, transform_indices = @transform_11, window_bounds = array<i64: 1, 32>}, {transform_indices = @transform_12, window_bounds = array<i64: 8, 32>}]} {
    %c0 = arith.constant 0 : index
    %c0_0 = arith.constant 0 : index
    %0 = vector.load %arg4[%c0, %c0_0] : memref<1x32xf32, #tpu.memory_space<vmem>>, vector<1x32xf32>
    %c0_1 = arith.constant 0 : index
    %c0_2 = arith.constant 0 : index
    %1 = vector.load %arg5[%c0_1, %c0_2] : memref<1x32xf32, #tpu.memory_space<vmem>>, vector<1x32xf32>
    %c0_3 = arith.constant 0 : index
    %c0_4 = arith.constant 0 : index
    %2 = vector.load %arg6[%c0_3, %c0_4] : memref<1x32xf32, #tpu.memory_space<vmem>>, vector<1x32xf32>
    %c0_5 = arith.constant 0 : index
    %c0_6 = arith.constant 0 : index
    %3 = vector.load %arg8[%c0_5, %c0_6] : memref<1x64xf32, #tpu.memory_space<vmem>>, vector<1x64xf32>
    %c0_7 = arith.constant 0 : index
    %c0_8 = arith.constant 0 : index
    %4 = vector.load %arg10[%c0_7, %c0_8] : memref<1x32xf32, #tpu.memory_space<vmem>>, vector<1x32xf32>
    %c0_9 = arith.constant 0 : index
    %c0_10 = arith.constant 0 : index
    %5 = vector.load %arg11[%c0_9, %c0_10] : memref<1x32xf32, #tpu.memory_space<vmem>>, vector<1x32xf32>
    %c0_11 = arith.constant 0 : index
    %c0_12 = arith.constant 0 : index
    %6 = vector.load %arg12[%c0_11, %c0_12] : memref<1x32xf32, #tpu.memory_space<vmem>>, vector<1x32xf32>
    %c0_13 = arith.constant 0 : index
    %c0_14 = arith.constant 0 : index
    %7 = vector.load %arg1[%c0_13, %c0_14] : memref<8x32xf32, #tpu.memory_space<vmem>>, vector<8x32xf32>
    %c0_15 = arith.constant 0 : index
    %c0_16 = arith.constant 0 : index
    %8 = vector.load %arg2[%c0_15, %c0_16] : memref<8x32xf32, #tpu.memory_space<vmem>>, vector<8x32xf32>
    %c0_17 = arith.constant 0 : index
    %c0_18 = arith.constant 0 : index
    %9 = vector.load %arg3[%c0_17, %c0_18] : memref<32x32xf32, #tpu.memory_space<vmem>>, vector<32x32xf32>
    %cst = arith.constant dense<0.000000e+00> : vector<8x32xf32>
    %10 = tpu.matmul %7, %9, %cst {dimension_numbers = #tpu.dot_dimension_numbers<[1], [0], [0], [1], [0, 0, 1, 1], [], []>} : vector<8x32xf32>, vector<32x32xf32>, vector<8x32xf32> -> vector<8x32xf32>
    %11 = vector.broadcast %0 : vector<1x32xf32> to vector<8x32xf32>
    %12 = arith.addf %10, %11 : vector<8x32xf32>
    %13 = arith.addf %12, %8 : vector<8x32xf32>
    %cst_19 = arith.constant dense<0.000000e+00> : vector<8xf32>
    %14 = vector.multi_reduction <add>, %13, %cst_19 [1] : vector<8x32xf32> to vector<8xf32>
    %15 = vector.shape_cast %14 : vector<8xf32> to vector<8x1xf32>
    %cst_20 = arith.constant 3.125000e-02 : f32
    %16 = vector.broadcast %cst_20 : f32 to vector<8x1xf32>
    %17 = arith.mulf %15, %16 : vector<8x1xf32>
    %18 = arith.mulf %13, %13 : vector<8x32xf32>
    %cst_21 = arith.constant dense<0.000000e+00> : vector<8xf32>
    %19 = vector.multi_reduction <add>, %18, %cst_21 [1] : vector<8x32xf32> to vector<8xf32>
    %20 = vector.shape_cast %19 : vector<8xf32> to vector<8x1xf32>
    %cst_22 = arith.constant 3.125000e-02 : f32
    %21 = vector.broadcast %cst_22 : f32 to vector<8x1xf32>
    %22 = arith.mulf %20, %21 : vector<8x1xf32>
    %23 = arith.mulf %17, %17 : vector<8x1xf32>
    %24 = arith.subf %22, %23 : vector<8x1xf32>
    %cst_23 = arith.constant 0.000000e+00 : f32
    %25 = vector.broadcast %cst_23 : f32 to vector<8x1xf32>
    %26 = arith.maximumf %24, %25 : vector<8x1xf32>
    %cst_24 = arith.constant 9.99999996E-13 : f32
    %27 = vector.broadcast %cst_24 : f32 to vector<8x1xf32>
    %28 = arith.addf %26, %27 : vector<8x1xf32>
    %29 = math.rsqrt %28 : vector<8x1xf32>
    %30 = vector.broadcast %17 : vector<8x1xf32> to vector<8x32xf32>
    %31 = arith.subf %13, %30 : vector<8x32xf32>
    %32 = vector.broadcast %29 : vector<8x1xf32> to vector<8x32xf32>
    %33 = arith.mulf %31, %32 : vector<8x32xf32>
    %34 = vector.broadcast %1 : vector<1x32xf32> to vector<8x32xf32>
    %35 = arith.mulf %33, %34 : vector<8x32xf32>
    %36 = vector.broadcast %2 : vector<1x32xf32> to vector<8x32xf32>
    %37 = arith.addf %35, %36 : vector<8x32xf32>
    %c0_25 = arith.constant 0 : index
    %c0_26 = arith.constant 0 : index
    %38 = vector.load %arg7[%c0_25, %c0_26] : memref<32x64xf32, #tpu.memory_space<vmem>>, vector<32x64xf32>
    %cst_27 = arith.constant dense<0.000000e+00> : vector<8x64xf32>
    %39 = tpu.matmul %37, %38, %cst_27 {dimension_numbers = #tpu.dot_dimension_numbers<[1], [0], [0], [1], [0, 0, 1, 1], [], []>} : vector<8x32xf32>, vector<32x64xf32>, vector<8x64xf32> -> vector<8x64xf32>
    %40 = vector.broadcast %3 : vector<1x64xf32> to vector<8x64xf32>
    %41 = arith.addf %39, %40 : vector<8x64xf32>
    %cst_28 = arith.constant 5.000000e-01 : f32
    %42 = vector.broadcast %cst_28 : f32 to vector<8x64xf32>
    %43 = arith.mulf %42, %41 : vector<8x64xf32>
    %cst_29 = arith.constant 0.707106769 : f32
    %44 = vector.broadcast %cst_29 : f32 to vector<8x64xf32>
    %45 = arith.mulf %41, %44 : vector<8x64xf32>
    %46 = math.erf %45 : vector<8x64xf32>
    %cst_30 = arith.constant 1.000000e+00 : f32
    %47 = vector.broadcast %cst_30 : f32 to vector<8x64xf32>
    %48 = arith.addf %47, %46 : vector<8x64xf32>
    %49 = arith.mulf %43, %48 : vector<8x64xf32>
    %c0_31 = arith.constant 0 : index
    %c0_32 = arith.constant 0 : index
    %50 = vector.load %arg9[%c0_31, %c0_32] : memref<64x32xf32, #tpu.memory_space<vmem>>, vector<64x32xf32>
    %cst_33 = arith.constant dense<0.000000e+00> : vector<8x32xf32>
    %51 = tpu.matmul %49, %50, %cst_33 {dimension_numbers = #tpu.dot_dimension_numbers<[1], [0], [0], [1], [0, 0, 1, 1], [], []>} : vector<8x64xf32>, vector<64x32xf32>, vector<8x32xf32> -> vector<8x32xf32>
    %52 = vector.broadcast %4 : vector<1x32xf32> to vector<8x32xf32>
    %53 = arith.addf %51, %52 : vector<8x32xf32>
    %54 = arith.addf %53, %37 : vector<8x32xf32>
    %cst_34 = arith.constant dense<0.000000e+00> : vector<8xf32>
    %55 = vector.multi_reduction <add>, %54, %cst_34 [1] : vector<8x32xf32> to vector<8xf32>
    %56 = vector.shape_cast %55 : vector<8xf32> to vector<8x1xf32>
    %cst_35 = arith.constant 3.125000e-02 : f32
    %57 = vector.broadcast %cst_35 : f32 to vector<8x1xf32>
    %58 = arith.mulf %56, %57 : vector<8x1xf32>
    %59 = arith.mulf %54, %54 : vector<8x32xf32>
    %cst_36 = arith.constant dense<0.000000e+00> : vector<8xf32>
    %60 = vector.multi_reduction <add>, %59, %cst_36 [1] : vector<8x32xf32> to vector<8xf32>
    %61 = vector.shape_cast %60 : vector<8xf32> to vector<8x1xf32>
    %cst_37 = arith.constant 3.125000e-02 : f32
    %62 = vector.broadcast %cst_37 : f32 to vector<8x1xf32>
    %63 = arith.mulf %61, %62 : vector<8x1xf32>
    %64 = arith.mulf %58, %58 : vector<8x1xf32>
    %65 = arith.subf %63, %64 : vector<8x1xf32>
    %cst_38 = arith.constant 0.000000e+00 : f32
    %66 = vector.broadcast %cst_38 : f32 to vector<8x1xf32>
    %67 = arith.maximumf %65, %66 : vector<8x1xf32>
    %cst_39 = arith.constant 9.99999996E-13 : f32
    %68 = vector.broadcast %cst_39 : f32 to vector<8x1xf32>
    %69 = arith.addf %67, %68 : vector<8x1xf32>
    %70 = math.rsqrt %69 : vector<8x1xf32>
    %71 = vector.broadcast %58 : vector<8x1xf32> to vector<8x32xf32>
    %72 = arith.subf %54, %71 : vector<8x32xf32>
    %73 = vector.broadcast %70 : vector<8x1xf32> to vector<8x32xf32>
    %74 = arith.mulf %72, %73 : vector<8x32xf32>
    %75 = vector.broadcast %5 : vector<1x32xf32> to vector<8x32xf32>
    %76 = arith.mulf %74, %75 : vector<8x32xf32>
    %77 = vector.broadcast %6 : vector<1x32xf32> to vector<8x32xf32>
    %78 = arith.addf %76, %77 : vector<8x32xf32>
    %c0_40 = arith.constant 0 : index
    %c0_41 = arith.constant 0 : index
    %79 = vector.load %arg13[%c0_40, %c0_41] : memref<8x32xf32, #tpu.memory_space<vmem>>, vector<8x32xf32>
    tpu.vector_store %arg13[%c0_40, %c0_41], %78 {strides = array<i32>} : memref<8x32xf32, #tpu.memory_space<vmem>>, vector<8x32xf32>,
    return
  }
  func.func @transform_0(%arg0: i32) -> (i32, i32) {
    %c0_i32 = arith.constant 0 : i32
    %c0_i32_0 = arith.constant 0 : i32
    return %arg0, %c0_i32 : i32, i32
  }
  func.func @transform_1(%arg0: i32) -> (i32, i32) {
    %c0_i32 = arith.constant 0 : i32
    %c0_i32_0 = arith.constant 0 : i32
    return %arg0, %c0_i32 : i32, i32
  }
  func.func @transform_2(%arg0: i32) -> (i32, i32) {
    %c0_i32 = arith.constant 0 : i32
    %c0_i32_0 = arith.constant 0 : i32
    %c0_i32_1 = arith.constant 0 : i32
    return %c0_i32, %c0_i32_0 : i32, i32
  }
  func.func @transform_3(%arg0: i32) -> (i32, i32) {
    %c0_i32 = arith.constant 0 : i32
    %c0_i32_0 = arith.constant 0 : i32
    %c0_i32_1 = arith.constant 0 : i32
    return %c0_i32, %c0_i32_0 : i32, i32
  }
  func.func @transform_4(%arg0: i32) -> (i32, i32) {
    %c0_i32 = arith.constant 0 : i32
    %c0_i32_0 = arith.constant 0 : i32
    %c0_i32_1 = arith.constant 0 : i32
    return %c0_i32, %c0_i32_0 : i32, i32
  }
  func.func @transform_5(%arg0: i32) -> (i32, i32) {
    %c0_i32 = arith.constant 0 : i32
    %c0_i32_0 = arith.constant 0 : i32
    %c0_i32_1 = arith.constant 0 : i32
    return %c0_i32, %c0_i32_0 : i32, i32
  }
  func.func @transform_6(%arg0: i32) -> (i32, i32) {
    %c0_i32 = arith.constant 0 : i32
    %c0_i32_0 = arith.constant 0 : i32
    %c0_i32_1 = arith.constant 0 : i32
    return %c0_i32, %c0_i32_0 : i32, i32
  }
  func.func @transform_7(%arg0: i32) -> (i32, i32) {
    %c0_i32 = arith.constant 0 : i32
    %c0_i32_0 = arith.constant 0 : i32
    %c0_i32_1 = arith.constant 0 : i32
    return %c0_i32, %c0_i32_0 : i32, i32
  }
  func.func @transform_8(%arg0: i32) -> (i32, i32) {
    %c0_i32 = arith.constant 0 : i32
    %c0_i32_0 = arith.constant 0 : i32
    %c0_i32_1 = arith.constant 0 : i32
    return %c0_i32, %c0_i32_0 : i32, i32
  }
  func.func @transform_9(%arg0: i32) -> (i32, i32) {
    %c0_i32 = arith.constant 0 : i32
    %c0_i32_0 = arith.constant 0 : i32
    %c0_i32_1 = arith.constant 0 : i32
    return %c0_i32, %c0_i32_0 : i32, i32
  }
  func.func @transform_10(%arg0: i32) -> (i32, i32) {
    %c0_i32 = arith.constant 0 : i32
    %c0_i32_0 = arith.constant 0 : i32
    %c0_i32_1 = arith.constant 0 : i32
    return %c0_i32, %c0_i32_0 : i32, i32
  }
  func.func @transform_11(%arg0: i32) -> (i32, i32) {
    %c0_i32 = arith.constant 0 : i32
    %c0_i32_0 = arith.constant 0 : i32
    %c0_i32_1 = arith.constant 0 : i32
    return %c0_i32, %c0_i32_0 : i32, i32
  }
  func.func @transform_12(%arg0: i32) -> (i32, i32) {
    %c0_i32 = arith.constant 0 : i32
    %c0_i32_0 = arith.constant 0 : i32
    return %arg0, %c0_i32 : i32, i32
  }
}

</mosaic_0001>

<llo_original>
// kernel: tpu_custom_call.1
$region0: #{tpu_custom_call.1}
  #allocation0 [shape = 'u32[]', space=smem, size = 0x4, offset = 0x4, fixed_abs, tag = 'smem constant byte address 0x4 - core index']
  #allocation1 [shape = 'u32[144,128]{1,0:T(1,128)}', space=vmem, size = 0x12000, scoped, tag = 'internal scratch']
  %s0 = inlined_call_operand.vmem [shape: f32[16,32], index: 0, kind: input, shape index: {}]
  %s1 = inlined_call_operand.vmem [shape: f32[16,32], index: 1, kind: input, shape index: {}]
  %s2 = inlined_call_operand.vmem [shape: f32[32,32], index: 2, kind: input, shape index: {}]
  %s3 = inlined_call_operand.vmem [shape: f32[1,32], index: 3, kind: input, shape index: {}]
  %s4 = inlined_call_operand.vmem [shape: f32[1,32], index: 4, kind: input, shape index: {}]
  %s5 = inlined_call_operand.vmem [shape: f32[1,32], index: 5, kind: input, shape index: {}]
  %s6 = inlined_call_operand.vmem [shape: f32[32,64], index: 6, kind: input, shape index: {}]
  %s7 = inlined_call_operand.vmem [shape: f32[1,64], index: 7, kind: input, shape index: {}]
  %s8 = inlined_call_operand.vmem [shape: f32[64,32], index: 8, kind: input, shape index: {}]
  %s9 = inlined_call_operand.vmem [shape: f32[1,32], index: 9, kind: input, shape index: {}]
  %s10 = inlined_call_operand.vmem [shape: f32[1,32], index: 10, kind: input, shape index: {}]
  %s11 = inlined_call_operand.vmem [shape: f32[1,32], index: 11, kind: input, shape index: {}]
  %s12 = inlined_call_operand.hbm [shape: f32[16,32], index: 12, kind: output, shape index: {}]
  %s13 = sld [smem:[#allocation0]]
  $region81: #{tpu_custom_call.1} parent=0
    _
  %s15 = ssub.s32 1, %s13
  %s16 = scalar_select 0, %s15, %s13
  $region1: #{tpu_custom_call.1} parent=0
    #allocation2 [shape = 'u8[8192]{0}', space=vmem, size = 0x2000, scoped, tag = 'output window, operand 0']
    #allocation3 [shape = 's32[2]{0}', space=sflag, size = 0x8, scoped, tag = 'scoped memory for tpu_custom_call.1']
    %17 = vsyncpa [#allocation3], 0
    %s18 = scalar_lea.sflag [#allocation3], 1
    %19 = vsyncpa %s18, 0
    loop: start=0, step=1, limit=4
    $region2: #{tpu_custom_call.1} parent=1 // loop_pre_header
      _
    $region3: #{tpu_custom_call.1} parent=1 // loop_header
      %s21 = sphi 0, %s25
      %p22 = scmp.ge.s32.totalorder %s21, 4
      %s31 = sphi 0, %s33
      %s34 = sphi 0, %s31
      %s35 = sphi 0, %s34
      %s51 = sphi 0, %s35
      %s57 = sphi 0, %s59
      %s60 = sphi 0, %s57
      %s61 = sphi 0, %s60
      %s77 = sphi 0, %s61
      %s81 = sphi 0, %s81
      %s83 = sphi 0, %s81
      %s84 = sphi 0, %s83
      %s98 = sphi 0, %s84
      %s102 = sphi 0, %s102
      %s104 = sphi 0, %s102
      %s105 = sphi 0, %s104
      %s119 = sphi 0, %s105
      %s123 = sphi 0, %s123
      %s125 = sphi 0, %s123
      %s126 = sphi 0, %s125
      %s140 = sphi 0, %s126
      %s144 = sphi 0, %s144
      %s146 = sphi 0, %s144
      %s147 = sphi 0, %s146
      %s161 = sphi 0, %s147
      %s165 = sphi 0, %s165
      %s167 = sphi 0, %s165
      %s168 = sphi 0, %s167
      %s182 = sphi 0, %s168
      %s186 = sphi 0, %s186
      %s188 = sphi 0, %s186
      %s189 = sphi 0, %s188
      %s203 = sphi 0, %s189
      %s207 = sphi 0, %s207
      %s209 = sphi 0, %s207
      %s210 = sphi 0, %s209
      %s224 = sphi 0, %s210
      %s228 = sphi 0, %s228
      %s230 = sphi 0, %s228
      %s231 = sphi 0, %s230
      %s245 = sphi 0, %s231
      %s249 = sphi 0, %s249
      %s251 = sphi 0, %s249
      %s252 = sphi 0, %s251
      %s266 = sphi 0, %s252
      %s270 = sphi 0, %s270
      %s272 = sphi 0, %s270
      %s273 = sphi 0, %s272
      %s287 = sphi 0, %s273
      %s293 = sphi 0, %s295
      %s296 = sphi 0, %s293
      %s297 = sphi 0, %s296
      %s313 = sphi 0, %s297
    $region4: #{tpu_custom_call.1} parent=1 // loop_header_branch
      %24 = sbr.rel (%p22) target = $region8
    $region5: #{tpu_custom_call.1} parent=1 // loop_body
      %s26 = ssub.s32 %s21, 1
      %s27 = ssub.s32 %s21, 2
      %s28 = sadd.s32 %s21, 1
      %s29 = ssub.s32 %s21, %s28
      %p30 = scmp.eq.s32.totalorder %s29, 0
      %s32 = sadd.s32 %s31, 1
      %s33 = scalar_select %p30, %s31, %s32
      %p36 = pneg %p30
      %p37 = scmp.eq.s32.totalorder %s21, 1
      %p38 = por %p36, %p37
      %p39 = scmp.ne.s32.totalorder %s31, %s34
      %p40 = scmp.eq.s32.totalorder %s21, 0
      %p41 = por %p39, %p40
      %p42 = scmp.ne.s32.totalorder %s31, %s34
      %p43 = scmp.eq.s32.totalorder %s26, 1
      %p44 = por %p42, %p43
      %p45 = scmp.ne.s32.totalorder %s34, %s35
      %p46 = scmp.eq.s32.totalorder %s26, 0
      %p47 = por %p45, %p46
      %p48 = scmp.ne.s32.totalorder %s34, %s35
      %p49 = scmp.eq.s32.totalorder %s27, 1
      %p50 = por %p48, %p49
      %p52 = scmp.ne.s32.totalorder %s35, %s51
      %p53 = scmp.eq.s32.totalorder %s27, 0
      %p54 = por %p52, %p53
      %s55 = ssub.s32 %s21, %s28
      %p56 = scmp.eq.s32.totalorder %s55, 0
      %s58 = sadd.s32 %s57, 1
      %s59 = scalar_select %p56, %s57, %s58
      %p62 = pneg %p56
      %p63 = scmp.eq.s32.totalorder %s21, 1
      %p64 = por %p62, %p63
      %p65 = scmp.ne.s32.totalorder %s57, %s60
      %p66 = scmp.eq.s32.totalorder %s21, 0
      %p67 = por %p65, %p66
      %p68 = scmp.ne.s32.totalorder %s57, %s60
      %p69 = scmp.eq.s32.totalorder %s26, 1
      %p70 = por %p68, %p69
      %p71 = scmp.ne.s32.totalorder %s60, %s61
      %p72 = scmp.eq.s32.totalorder %s26, 0
      %p73 = por %p71, %p72
      %p74 = scmp.ne.s32.totalorder %s60, %s61
      %p75 = scmp.eq.s32.totalorder %s27, 1
      %p76 = por %p74, %p75
      %p78 = scmp.ne.s32.totalorder %s61, %s77
      %p79 = scmp.eq.s32.totalorder %s27, 0
      %p80 = por %p78, %p79
      %s82 = sadd.s32 %s81, 1
      %p85 = scmp.eq.s32.totalorder %s21, 1
      %p86 = scmp.ne.s32.totalorder %s81, %s83
      %p87 = scmp.eq.s32.totalorder %s21, 0
      %p88 = por %p86, %p87
      %p89 = scmp.ne.s32.totalorder %s81, %s83
      %p90 = scmp.eq.s32.totalorder %s26, 1
      %p91 = por %p89, %p90
      %p92 = scmp.ne.s32.totalorder %s83, %s84
      %p93 = scmp.eq.s32.totalorder %s26, 0
      %p94 = por %p92, %p93
      %p95 = scmp.ne.s32.totalorder %s83, %s84
      %p96 = scmp.eq.s32.totalorder %s27, 1
      %p97 = por %p95, %p96
      %p99 = scmp.ne.s32.totalorder %s84, %s98
      %p100 = scmp.eq.s32.totalorder %s27, 0
      %p101 = por %p99, %p100
      %s103 = sadd.s32 %s102, 1
      %p106 = scmp.eq.s32.totalorder %s21, 1
      %p107 = scmp.ne.s32.totalorder %s102, %s104
      %p108 = scmp.eq.s32.totalorder %s21, 0
      %p109 = por %p107, %p108
      %p110 = scmp.ne.s32.totalorder %s102, %s104
      %p111 = scmp.eq.s32.totalorder %s26, 1
      %p112 = por %p110, %p111
      %p113 = scmp.ne.s32.totalorder %s104, %s105
      %p114 = scmp.eq.s32.totalorder %s26, 0
      %p115 = por %p113, %p114
      %p116 = scmp.ne.s32.totalorder %s104, %s105
      %p117 = scmp.eq.s32.totalorder %s27, 1
      %p118 = por %p116, %p117
      %p120 = scmp.ne.s32.totalorder %s105, %s119
      %p121 = scmp.eq.s32.totalorder %s27, 0
      %p122 = por %p120, %p121
      %s124 = sadd.s32 %s123, 1
      %p127 = scmp.eq.s32.totalorder %s21, 1
      %p128 = scmp.ne.s32.totalorder %s123, %s125
      %p129 = scmp.eq.s32.totalorder %s21, 0
      %p130 = por %p128, %p129
      %p131 = scmp.ne.s32.totalorder %s123, %s125
      %p132 = scmp.eq.s32.totalorder %s26, 1
      %p133 = por %p131, %p132
      %p134 = scmp.ne.s32.totalorder %s125, %s126
      %p135 = scmp.eq.s32.totalorder %s26, 0
      %p136 = por %p134, %p135
      %p137 = scmp.ne.s32.totalorder %s125, %s126
      %p138 = scmp.eq.s32.totalorder %s27, 1
      %p139 = por %p137, %p138
      %p141 = scmp.ne.s32.totalorder %s126, %s140
      %p142 = scmp.eq.s32.totalorder %s27, 0
      %p143 = por %p141, %p142
      %s145 = sadd.s32 %s144, 1
      %p148 = scmp.eq.s32.totalorder %s21, 1
      %p149 = scmp.ne.s32.totalorder %s144, %s146
      %p150 = scmp.eq.s32.totalorder %s21, 0
      %p151 = por %p149, %p150
      %p152 = scmp.ne.s32.totalorder %s144, %s146
      %p153 = scmp.eq.s32.totalorder %s26, 1
      %p154 = por %p152, %p153
      %p155 = scmp.ne.s32.totalorder %s146, %s147
      %p156 = scmp.eq.s32.totalorder %s26, 0
      %p157 = por %p155, %p156
      %p158 = scmp.ne.s32.totalorder %s146, %s147
      %p159 = scmp.eq.s32.totalorder %s27, 1
      %p160 = por %p158, %p159
      %p162 = scmp.ne.s32.totalorder %s147, %s161
      %p163 = scmp.eq.s32.totalorder %s27, 0
      %p164 = por %p162, %p163
      %s166 = sadd.s32 %s165, 1
      %p169 = scmp.eq.s32.totalorder %s21, 1
      %p170 = scmp.ne.s32.totalorder %s165, %s167
      %p171 = scmp.eq.s32.totalorder %s21, 0
      %p172 = por %p170, %p171
      %p173 = scmp.ne.s32.totalorder %s165, %s167
      %p174 = scmp.eq.s32.totalorder %s26, 1
      %p175 = por %p173, %p174
      %p176 = scmp.ne.s32.totalorder %s167, %s168
      %p177 = scmp.eq.s32.totalorder %s26, 0
      %p178 = por %p176, %p177
      %p179 = scmp.ne.s32.totalorder %s167, %s168
      %p180 = scmp.eq.s32.totalorder %s27, 1
      %p181 = por %p179, %p180
      %p183 = scmp.ne.s32.totalorder %s168, %s182
      %p184 = scmp.eq.s32.totalorder %s27, 0
      %p185 = por %p183, %p184
      %s187 = sadd.s32 %s186, 1
      %p190 = scmp.eq.s32.totalorder %s21, 1
      %p191 = scmp.ne.s32.totalorder %s186, %s188
      %p192 = scmp.eq.s32.totalorder %s21, 0
      %p193 = por %p191, %p192
      %p194 = scmp.ne.s32.totalorder %s186, %s188
      %p195 = scmp.eq.s32.totalorder %s26, 1
      %p196 = por %p194, %p195
      %p197 = scmp.ne.s32.totalorder %s188, %s189
      %p198 = scmp.eq.s32.totalorder %s26, 0
      %p199 = por %p197, %p198
      %p200 = scmp.ne.s32.totalorder %s188, %s189
      %p201 = scmp.eq.s32.totalorder %s27, 1
      %p202 = por %p200, %p201
      %p204 = scmp.ne.s32.totalorder %s189, %s203
      %p205 = scmp.eq.s32.totalorder %s27, 0
      %p206 = por %p204, %p205
      %s208 = sadd.s32 %s207, 1
      %p211 = scmp.eq.s32.totalorder %s21, 1
      %p212 = scmp.ne.s32.totalorder %s207, %s209
      %p213 = scmp.eq.s32.totalorder %s21, 0
      %p214 = por %p212, %p213
      %p215 = scmp.ne.s32.totalorder %s207, %s209
      %p216 = scmp.eq.s32.totalorder %s26, 1
      %p217 = por %p215, %p216
      %p218 = scmp.ne.s32.totalorder %s209, %s210
      %p219 = scmp.eq.s32.totalorder %s26, 0
      %p220 = por %p218, %p219
      %p221 = scmp.ne.s32.totalorder %s209, %s210
      %p222 = scmp.eq.s32.totalorder %s27, 1
      %p223 = por %p221, %p222
      %p225 = scmp.ne.s32.totalorder %s210, %s224
      %p226 = scmp.eq.s32.totalorder %s27, 0
      %p227 = por %p225, %p226
      %s229 = sadd.s32 %s228, 1
      %p232 = scmp.eq.s32.totalorder %s21, 1
      %p233 = scmp.ne.s32.totalorder %s228, %s230
      %p234 = scmp.eq.s32.totalorder %s21, 0
      %p235 = por %p233, %p234
      %p236 = scmp.ne.s32.totalorder %s228, %s230
      %p237 = scmp.eq.s32.totalorder %s26, 1
      %p238 = por %p236, %p237
      %p239 = scmp.ne.s32.totalorder %s230, %s231
      %p240 = scmp.eq.s32.totalorder %s26, 0
      %p241 = por %p239, %p240
      %p242 = scmp.ne.s32.totalorder %s230, %s231
      %p243 = scmp.eq.s32.totalorder %s27, 1
      %p244 = por %p242, %p243
      %p246 = scmp.ne.s32.totalorder %s231, %s245
      %p247 = scmp.eq.s32.totalorder %s27, 0
      %p248 = por %p246, %p247
      %s250 = sadd.s32 %s249, 1
      %p253 = scmp.eq.s32.totalorder %s21, 1
      %p254 = scmp.ne.s32.totalorder %s249, %s251
      %p255 = scmp.eq.s32.totalorder %s21, 0
      %p256 = por %p254, %p255
      %p257 = scmp.ne.s32.totalorder %s249, %s251
      %p258 = scmp.eq.s32.totalorder %s26, 1
      %p259 = por %p257, %p258
      %p260 = scmp.ne.s32.totalorder %s251, %s252
      %p261 = scmp.eq.s32.totalorder %s26, 0
      %p262 = por %p260, %p261
      %p263 = scmp.ne.s32.totalorder %s251, %s252
      %p264 = scmp.eq.s32.totalorder %s27, 1
      %p265 = por %p263, %p264
      %p267 = scmp.ne.s32.totalorder %s252, %s266
      %p268 = scmp.eq.s32.totalorder %s27, 0
      %p269 = por %p267, %p268
      %s271 = sadd.s32 %s270, 1
      %p274 = scmp.eq.s32.totalorder %s21, 1
      %p275 = scmp.ne.s32.totalorder %s270, %s272
      %p276 = scmp.eq.s32.totalorder %s21, 0
      %p277 = por %p275, %p276
      %p278 = scmp.ne.s32.totalorder %s270, %s272
      %p279 = scmp.eq.s32.totalorder %s26, 1
      %p280 = por %p278, %p279
      %p281 = scmp.ne.s32.totalorder %s272, %s273
      %p282 = scmp.eq.s32.totalorder %s26, 0
      %p283 = por %p281, %p282
      %p284 = scmp.ne.s32.totalorder %s272, %s273
      %p285 = scmp.eq.s32.totalorder %s27, 1
      %p286 = por %p284, %p285
      %p288 = scmp.ne.s32.totalorder %s273, %s287
      %p289 = scmp.eq.s32.totalorder %s27, 0
      %p290 = por %p288, %p289
      %s291 = ssub.s32 %s21, %s28
      %p292 = scmp.eq.s32.totalorder %s291, 0
      %s294 = sadd.s32 %s293, 1
      %s295 = scalar_select %p292, %s293, %s294
      %p298 = pneg %p292
      %p299 = scmp.eq.s32.totalorder %s21, 1
      %p300 = por %p298, %p299
      %p301 = scmp.ne.s32.totalorder %s293, %s296
      %p302 = scmp.eq.s32.totalorder %s21, 0
      %p303 = por %p301, %p302
      %p304 = scmp.ne.s32.totalorder %s293, %s296
      %p305 = scmp.eq.s32.totalorder %s26, 1
      %p306 = por %p304, %p305
      %p307 = scmp.ne.s32.totalorder %s296, %s297
      %p308 = scmp.eq.s32.totalorder %s26, 0
      %p309 = por %p307, %p308
      %p310 = scmp.ne.s32.totalorder %s296, %s297
      %p311 = scmp.eq.s32.totalorder %s27, 1
      %p312 = por %p310, %p311
      %p314 = scmp.ne.s32.totalorder %s297, %s313
      %p315 = scmp.eq.s32.totalorder %s27, 0
      %p316 = por %p314, %p315
      %p317 = scmp.le.s32.totalorder 1, %s21
      %p318 = scmp.lt.s32.totalorder %s21, 3
      %p319 = pnand %p317, %p318
      %p320 = pneg %p319
      // Predicated region
      $region9: #{tpu_custom_call.1} parent=5 // pred_check
        _
      $region10: #{tpu_custom_call.1} parent=5 // pred_check_branch
        %322 = sbr.rel (%p319) target = $region12
      $region11: #{tpu_custom_call.1} parent=5 // pred_region
        %s323 = ssub.s32 %s21, 1
        // Predicated region
        $region13: #{tpu_custom_call.1} parent=11 // pred_check
          %p324 = pneg %p94
        $region14: #{tpu_custom_call.1} parent=11 // pred_check_branch
          %326 = sbr.rel (%p324) target = $region16
        $region15: #{tpu_custom_call.1} parent=11 // pred_region
          _
        $region16: #{tpu_custom_call.1} parent=11 // pred_fallthru
          _
        // Predicated region
        $region17: #{tpu_custom_call.1} parent=11 // pred_check
          %p327 = pneg %p115
        $region18: #{tpu_custom_call.1} parent=11 // pred_check_branch
          %329 = sbr.rel (%p327) target = $region20
        $region19: #{tpu_custom_call.1} parent=11 // pred_region
          _
        $region20: #{tpu_custom_call.1} parent=11 // pred_fallthru
          _
        // Predicated region
        $region21: #{tpu_custom_call.1} parent=11 // pred_check
          %p330 = pneg %p136
        $region22: #{tpu_custom_call.1} parent=11 // pred_check_branch
          %332 = sbr.rel (%p330) target = $region24
        $region23: #{tpu_custom_call.1} parent=11 // pred_region
          _
        $region24: #{tpu_custom_call.1} parent=11 // pred_fallthru
          _
        // Predicated region
        $region25: #{tpu_custom_call.1} parent=11 // pred_check
          %p333 = pneg %p157
        $region26: #{tpu_custom_call.1} parent=11 // pred_check_branch
          %335 = sbr.rel (%p333) target = $region28
        $region27: #{tpu_custom_call.1} parent=11 // pred_region
          _
        $region28: #{tpu_custom_call.1} parent=11 // pred_fallthru
          _
        // Predicated region
        $region29: #{tpu_custom_call.1} parent=11 // pred_check
          %p336 = pneg %p178
        $region30: #{tpu_custom_call.1} parent=11 // pred_check_branch
          %338 = sbr.rel (%p336) target = $region32
        $region31: #{tpu_custom_call.1} parent=11 // pred_region
          _
        $region32: #{tpu_custom_call.1} parent=11 // pred_fallthru
          _
        // Predicated region
        $region33: #{tpu_custom_call.1} parent=11 // pred_check
          %p339 = pneg %p199
        $region34: #{tpu_custom_call.1} parent=11 // pred_check_branch
          %341 = sbr.rel (%p339) target = $region36
        $region35: #{tpu_custom_call.1} parent=11 // pred_region
          _
        $region36: #{tpu_custom_call.1} parent=11 // pred_fallthru
          _
        // Predicated region
        $region37: #{tpu_custom_call.1} parent=11 // pred_check
          %p342 = pneg %p220
        $region38: #{tpu_custom_call.1} parent=11 // pred_check_branch
          %344 = sbr.rel (%p342) target = $region40
        $region39: #{tpu_custom_call.1} parent=11 // pred_region
          _
        $region40: #{tpu_custom_call.1} parent=11 // pred_fallthru
          _
        // Predicated region
        $region41: #{tpu_custom_call.1} parent=11 // pred_check
          %p345 = pneg %p241
        $region42: #{tpu_custom_call.1} parent=11 // pred_check_branch
          %347 = sbr.rel (%p345) target = $region44
        $region43: #{tpu_custom_call.1} parent=11 // pred_region
          _
        $region44: #{tpu_custom_call.1} parent=11 // pred_fallthru
          _
        // Predicated region
        $region45: #{tpu_custom_call.1} parent=11 // pred_check
          %p348 = pneg %p262
        $region46: #{tpu_custom_call.1} parent=11 // pred_check_branch
          %350 = sbr.rel (%p348) target = $region48
        $region47: #{tpu_custom_call.1} parent=11 // pred_region
          _
        $region48: #{tpu_custom_call.1} parent=11 // pred_fallthru
          _
        // Predicated region
        $region49: #{tpu_custom_call.1} parent=11 // pred_check
          %p351 = pneg %p283
        $region50: #{tpu_custom_call.1} parent=11 // pred_check_branch
          %353 = sbr.rel (%p351) target = $region52
        $region51: #{tpu_custom_call.1} parent=11 // pred_region
          _
        $region52: #{tpu_custom_call.1} parent=11 // pred_fallthru
          _
      $region12: #{tpu_custom_call.1} parent=5 // pred_fallthru
        _
      %p354 = scmp.lt.s32.totalorder %s21, 2
      // Predicated region
      $region53: #{tpu_custom_call.1} parent=5 // pred_check
        %p355 = pneg %p354
      $region54: #{tpu_custom_call.1} parent=5 // pred_check_branch
        %357 = sbr.rel (%p355) target = $region56
      $region55: #{tpu_custom_call.1} parent=5 // pred_region
        // Predicated region
        $region57: #{tpu_custom_call.1} parent=55 // pred_check
          %p358 = pneg %p41
        $region58: #{tpu_custom_call.1} parent=55 // pred_check_branch
          %360 = sbr.rel (%p358) target = $region60
        $region59: #{tpu_custom_call.1} parent=55 // pred_region
          %p361 = scmp.lt.s32.totalorder %s21, 1
          %s362 = scalar_select %p361, %s21, 1
          %s363 = smul.addr %s362, 8
          %s364 = scalar_lea.vmem %s0, %s363
        $region60: #{tpu_custom_call.1} parent=55 // pred_fallthru
          _
        // Predicated region
        $region61: #{tpu_custom_call.1} parent=55 // pred_check
          %p365 = pneg %p67
        $region62: #{tpu_custom_call.1} parent=55 // pred_check_branch
          %367 = sbr.rel (%p365) target = $region64
        $region63: #{tpu_custom_call.1} parent=55 // pred_region
          %p368 = scmp.lt.s32.totalorder %s21, 1
          %s369 = scalar_select %p368, %s21, 1
          %s370 = smul.addr %s369, 8
          %s371 = scalar_lea.vmem %s1, %s370
        $region64: #{tpu_custom_call.1} parent=55 // pred_fallthru
          _
      $region56: #{tpu_custom_call.1} parent=5 // pred_fallthru
        _
      %p372 = scmp.le.s32.totalorder 1, %s21
      %p373 = scmp.lt.s32.totalorder %s21, 3
      %p374 = pnand %p372, %p373
      %p375 = pneg %p374
      // Predicated region
      $region65: #{tpu_custom_call.1} parent=5 // pred_check
        _
      $region66: #{tpu_custom_call.1} parent=5 // pred_check_branch
        %377 = sbr.rel (%p374) target = $region68
      $region67: #{tpu_custom_call.1} parent=5 // pred_region
        %s378 = ssub.s32 %s21, 1
        %p379 = scmp.lt.s32.totalorder %s26, 1
        %s380 = scalar_select %p379, %s26, 1
        %s381 = smul.addr %s380, 8
        %s382 = scalar_lea.vmem %s0, %s381
        %p383 = pneg %p47
        %p384 = pneg %p44
        %p385 = scmp.lt.s32.totalorder %s26, 1
        %s386 = scalar_select %p385, %s26, 1
        %s387 = smul.addr %s386, 8
        %s388 = scalar_lea.vmem %s1, %s387
        %p389 = pneg %p73
        %p390 = pneg %p70
        %p391 = pneg %p94
        %p392 = pneg %p91
        %p393 = pneg %p115
        %p394 = pneg %p112
        %p395 = pneg %p136
        %p396 = pneg %p133
        %p397 = pneg %p157
        %p398 = pneg %p154
        %p399 = pneg %p178
        %p400 = pneg %p175
        %p401 = pneg %p199
        %p402 = pneg %p196
        %p403 = pneg %p220
        %p404 = pneg %p217
        %p405 = pneg %p241
        %p406 = pneg %p238
        %p407 = pneg %p262
        %p408 = pneg %p259
        %p409 = pneg %p283
        %p410 = pneg %p280
        %p411 = pneg %p309
        %p412 = pneg %p306
        %s413 = sand.u32 %s296, 1
        %s414 = scalar_lea.sflag [#allocation3], %s413
        %s415 = sand.u32 %s296, 1
        %s416 = smul.addr %s415, 8
        %s417 = scalar_lea.vmem [#allocation2], %s416
        %p418 = scmp.lt.s32.totalorder %s26, 1
        %s419 = scalar_select %p418, %s26, 1
        %s420 = smul.addr %s419, 8
        %s421 = scalar_lea.vmem %s0, %s420
        %p422 = scmp.lt.s32.totalorder %s26, 1
        %s423 = scalar_select %p422, %s26, 1
        %s424 = smul.addr %s423, 8
        %s425 = scalar_lea.vmem %s1, %s424
        %v426 = vld [vmem:[%s3] sm:$0x1]
        %v427 = vld [vmem:[%s4] sm:$0x1]
        %v428 = vld [vmem:[%s5] sm:$0x1]
        %v429 = vld [vmem:[%s7] sm:$0x1]
        %v430 = vld [vmem:[%s9] sm:$0x1]
        %v431 = vld [vmem:[%s10] sm:$0x1]
        %v432 = vld [vmem:[%s11] sm:$0x1]
        %v433 = vld [vmem:[%s421] sm:$0xff]
        %v434 = vld [vmem:[%s425] sm:$0xff]
        %v435 = vld [vmem:[%s2] sm:$0xff]
        %v436 = vld [vmem:[%s2 + $0x8] sm:$0xff]
        %v437 = vld [vmem:[%s2 + $0x10] sm:$0xff]
        %v438 = vld [vmem:[%s2 + $0x18] sm:$0xff]
        %v440 = vlaneseq
        %v441 = vshrl.u32 %v440, 7
        %v442 = vsub.s32 0, %v441
        %v443 = vrot.slane %v426, %v442
        %vm445 = vcmask 261120
        %v447 = vsel %vm445, %v433, 0
        %449 = vmatprep.subr.mxu0 0.0
        %450 = vmatpush1.msra.mxu0 %v435
        %451 = vmatprep.subr.mxu0 0.0
        %452 = vmatpush1.msra.mxu0 %v436
        %453 = vmatprep.subr.mxu0 0.0
        %454 = vmatpush1.msra.mxu0 %v437
        %455 = vmatprep.subr.mxu0 0.0
        %456 = vmatpush1.msra.mxu0 %v438
        %457 = vmatprep.subr.mxu0 0.0
        %458 = vmatpush1.msra.mxu0 0.0
        %459 = vmatprep.subr.mxu0 0.0
        %460 = vmatpush1.msra.mxu0 0.0
        %461 = vmatprep.subr.mxu0 0.0
        %462 = vmatpush1.msra.mxu0 0.0
        %463 = vmatprep.subr.mxu0 0.0
        %464 = vmatpush1.msra.mxu0 0.0
        %465 = vmatprep.subr.mxu0 0.0
        %466 = vmatpush1.msra.mxu0 0.0
        %467 = vmatprep.subr.mxu0 0.0
        %468 = vmatpush1.msra.mxu0 0.0
        %469 = vmatprep.subr.mxu0 0.0
        %470 = vmatpush1.msra.mxu0 0.0
        %471 = vmatprep.subr.mxu0 0.0
        %472 = vmatpush1.msra.mxu0 0.0
        %473 = vmatprep.subr.mxu0 0.0
        %474 = vmatpush1.msra.mxu0 0.0
        %475 = vmatprep.subr.mxu0 0.0
        %476 = vmatpush1.msra.mxu0 0.0
        %477 = vmatprep.subr.mxu0 0.0
        %478 = vmatpush1.msra.mxu0 0.0
        %479 = vmatprep.subr.mxu0 0.0
        %480 = vmatpush1.msra.mxu0 0.0
        %481 = vmatprep.subr.mxu0 0.0
        %482 = vmatpush1.msra.mxu0 0.0
        %483 = vmatprep.subr.mxu0 0.0
        %484 = vmatpush1.msra.mxu0 0.0
        %485 = vmatprep.subr.mxu0 0.0
        %486 = vmatpush1.msra.mxu0 0.0
        %487 = vmatprep.subr.mxu0 0.0
        %488 = vmatpush1.msra.mxu0 0.0
        %489 = vmatprep.subr.mxu0 0.0
        %490 = vmatpush1.msra.mxu0 0.0
        %491 = vmatprep.subr.mxu0 0.0
        %492 = vmatpush1.msra.mxu0 0.0
        %493 = vmatprep.subr.mxu0 0.0
        %494 = vmatpush1.msra.mxu0 0.0
        %495 = vmatprep.subr.mxu0 0.0
        %496 = vmatpush1.msra.mxu0 0.0
        %497 = vmatprep.subr.mxu0 0.0
        %498 = vmatpush1.msra.mxu0 0.0
        %499 = vmatprep.subr.mxu0 0.0
        %500 = vmatpush1.msra.mxu0 0.0
        %501 = vmatprep.subr.mxu0 0.0
        %502 = vmatpush1.msra.mxu0 0.0
        %503 = vmatprep.subr.mxu0 0.0
        %504 = vmatpush1.msra.mxu0 0.0
        %505 = vmatprep.subr.mxu0 0.0
        %506 = vmatpush1.msra.mxu0 0.0
        %507 = vmatprep.subr.mxu0 0.0
        %508 = vmatpush1.msra.mxu0 0.0
        %509 = vmatprep.subr.mxu0 0.0
        %510 = vmatpush1.msra.mxu0 0.0
        %511 = vmatprep.subr.mxu0 0.0
        %512 = vmatpush1.msra.mxu0 0.0
        %513 = vmatprep.mubr.f32.mxu0 0.0
        %514 = vmatmul.mubr.f32.gmra.mrb[0].mxu0 %v447
        %v515 = vpop.f32.mrb[0].mxu0
        %v516 = vadd.f32 %v443, %v515
        %v517 = vpop.f32.mrb[0].mxu0
        %518 = vdwg.mxu0
        %v519 = vadd.f32 %v516, %v434
        %v520 = vsel %vm445, %v519, 0.0
        %521 = vadd.xlane.f32.xlu0 %v520
        %v522 = vpop.xlane.xlu0 %521
        %v523 = vmul.f32 %v522, 0.03125
        %v524 = vmul.f32 %v519, %v519
        %v525 = vsel %vm445, %v524, 0.0
        %526 = vadd.xlane.f32.xlu0 %v525
        %v527 = vpop.xlane.xlu0 %526
        %v528 = vmul.f32 %v527, 0.03125
        %v529 = vmul.f32 %v523, %v523
        %v530 = vsub.f32 %v528, %v529
        %v531 = vmax.f32 %v530, 0.0
        %v532 = vadd.f32 %v531, 1e-12
        %v533 = vrsqrt.pop %v532
        %v534 = vsub.f32 %v519, %v523
        %v535 = vmul.f32 %v534, %v533
        %v537 = vlaneseq
        %v538 = vshrl.u32 %v537, 7
        %v539 = vsub.s32 0, %v538
        %v540 = vrot.slane %v427, %v539
        %v542 = vmul.f32 %v535, %v540
        %v544 = vlaneseq
        %v545 = vshrl.u32 %v544, 7
        %v546 = vsub.s32 0, %v545
        %v547 = vrot.slane %v428, %v546
        %v549 = vadd.f32 %v542, %v547
        %v550 = vld [vmem:[%s6] sm:$0xff]
        %v551 = vld [vmem:[%s6 + $0x8] sm:$0xff]
        %v552 = vld [vmem:[%s6 + $0x10] sm:$0xff]
        %v553 = vld [vmem:[%s6 + $0x18] sm:$0xff]
        %v555 = vlaneseq
        %v556 = vshrl.u32 %v555, 7
        %v557 = vsub.s32 0, %v556
        %v558 = vrot.slane %v429, %v557
        %v561 = vsel %vm445, %v549, 0
        %563 = vmatprep.subr.mxu0 0.0
        %564 = vmatpush1.msra.mxu0 %v550
        %565 = vmatprep.subr.mxu0 0.0
        %566 = vmatpush1.msra.mxu0 %v551
        %567 = vmatprep.subr.mxu0 0.0
        %568 = vmatpush1.msra.mxu0 %v552
        %569 = vmatprep.subr.mxu0 0.0
        %570 = vmatpush1.msra.mxu0 %v553
        %571 = vmatprep.subr.mxu0 0.0
        %572 = vmatpush1.msra.mxu0 0.0
        %573 = vmatprep.subr.mxu0 0.0
        %574 = vmatpush1.msra.mxu0 0.0
        %575 = vmatprep.subr.mxu0 0.0
        %576 = vmatpush1.msra.mxu0 0.0
        %577 = vmatprep.subr.mxu0 0.0
        %578 = vmatpush1.msra.mxu0 0.0
        %579 = vmatprep.subr.mxu0 0.0
        %580 = vmatpush1.msra.mxu0 0.0
        %581 = vmatprep.subr.mxu0 0.0
        %582 = vmatpush1.msra.mxu0 0.0
        %583 = vmatprep.subr.mxu0 0.0
        %584 = vmatpush1.msra.mxu0 0.0
        %585 = vmatprep.subr.mxu0 0.0
        %586 = vmatpush1.msra.mxu0 0.0
        %587 = vmatprep.subr.mxu0 0.0
        %588 = vmatpush1.msra.mxu0 0.0
        %589 = vmatprep.subr.mxu0 0.0
        %590 = vmatpush1.msra.mxu0 0.0
        %591 = vmatprep.subr.mxu0 0.0
        %592 = vmatpush1.msra.mxu0 0.0
        %593 = vmatprep.subr.mxu0 0.0
        %594 = vmatpush1.msra.mxu0 0.0
        %595 = vmatprep.subr.mxu0 0.0
        %596 = vmatpush1.msra.mxu0 0.0
        %597 = vmatprep.subr.mxu0 0.0
        %598 = vmatpush1.msra.mxu0 0.0
        %599 = vmatprep.subr.mxu0 0.0
        %600 = vmatpush1.msra.mxu0 0.0
        %601 = vmatprep.subr.mxu0 0.0
        %602 = vmatpush1.msra.mxu0 0.0
        %603 = vmatprep.subr.mxu0 0.0
        %604 = vmatpush1.msra.mxu0 0.0
        %605 = vmatprep.subr.mxu0 0.0
        %606 = vmatpush1.msra.mxu0 0.0
        %607 = vmatprep.subr.mxu0 0.0
        %608 = vmatpush1.msra.mxu0 0.0
        %609 = vmatprep.subr.mxu0 0.0
        %610 = vmatpush1.msra.mxu0 0.0
        %611 = vmatprep.subr.mxu0 0.0
        %612 = vmatpush1.msra.mxu0 0.0
        %613 = vmatprep.subr.mxu0 0.0
        %614 = vmatpush1.msra.mxu0 0.0
        %615 = vmatprep.subr.mxu0 0.0
        %616 = vmatpush1.msra.mxu0 0.0
        %617 = vmatprep.subr.mxu0 0.0
        %618 = vmatpush1.msra.mxu0 0.0
        %619 = vmatprep.subr.mxu0 0.0
        %620 = vmatpush1.msra.mxu0 0.0
        %621 = vmatprep.subr.mxu0 0.0
        %622 = vmatpush1.msra.mxu0 0.0
        %623 = vmatprep.subr.mxu0 0.0
        %624 = vmatpush1.msra.mxu0 0.0
        %625 = vmatprep.subr.mxu0 0.0
        %626 = vmatpush1.msra.mxu0 0.0
        %627 = vmatprep.mubr.f32.mxu0 0.0
        %628 = vmatmul.mubr.f32.gmra.mrb[0].mxu0 %v561
        %v629 = vpop.f32.mrb[0].mxu0
        %v630 = vadd.f32 %v558, %v629
        %v631 = vpop.f32.mrb[0].mxu0
        %632 = vdwg.mxu0
        %v633 = vmul.f32 %v630, 0.5
        %v634 = vmul.f32 %v630, 0.70710677
        %v635 = verf.f32.pop %v634
        %v636 = vadd.f32 %v635, 1.0
        %v637 = vmul.f32 %v633, %v636
        %v638 = vld [vmem:[%s8] sm:$0xff]
        %v639 = vld [vmem:[%s8 + $0x8] sm:$0xff]
        %v640 = vld [vmem:[%s8 + $0x10] sm:$0xff]
        %v641 = vld [vmem:[%s8 + $0x18] sm:$0xff]
        %v642 = vld [vmem:[%s8 + $0x20] sm:$0xff]
        %v643 = vld [vmem:[%s8 + $0x28] sm:$0xff]
        %v644 = vld [vmem:[%s8 + $0x30] sm:$0xff]
        %v645 = vld [vmem:[%s8 + $0x38] sm:$0xff]
        %v647 = vlaneseq
        %v648 = vshrl.u32 %v647, 7
        %v649 = vsub.s32 0, %v648
        %v650 = vrot.slane %v430, %v649
        %vm652 = vcmask 523264
        %v654 = vsel %vm652, %v637, 0
        %656 = vmatprep.subr.mxu0 0.0
        %657 = vmatpush1.msra.mxu0 %v638
        %658 = vmatprep.subr.mxu0 0.0
        %659 = vmatpush1.msra.mxu0 %v639
        %660 = vmatprep.subr.mxu0 0.0
        %661 = vmatpush1.msra.mxu0 %v640
        %662 = vmatprep.subr.mxu0 0.0
        %663 = vmatpush1.msra.mxu0 %v641
        %664 = vmatprep.subr.mxu0 0.0
        %665 = vmatpush1.msra.mxu0 %v642
        %666 = vmatprep.subr.mxu0 0.0
        %667 = vmatpush1.msra.mxu0 %v643
        %668 = vmatprep.subr.mxu0 0.0
        %669 = vmatpush1.msra.mxu0 %v644
        %670 = vmatprep.subr.mxu0 0.0
        %671 = vmatpush1.msra.mxu0 %v645
        %672 = vmatprep.subr.mxu0 0.0
        %673 = vmatpush1.msra.mxu0 0.0
        %674 = vmatprep.subr.mxu0 0.0
        %675 = vmatpush1.msra.mxu0 0.0
        %676 = vmatprep.subr.mxu0 0.0
        %677 = vmatpush1.msra.mxu0 0.0
        %678 = vmatprep.subr.mxu0 0.0
        %679 = vmatpush1.msra.mxu0 0.0
        %680 = vmatprep.subr.mxu0 0.0
        %681 = vmatpush1.msra.mxu0 0.0
        %682 = vmatprep.subr.mxu0 0.0
        %683 = vmatpush1.msra.mxu0 0.0
        %684 = vmatprep.subr.mxu0 0.0
        %685 = vmatpush1.msra.mxu0 0.0
        %686 = vmatprep.subr.mxu0 0.0
        %687 = vmatpush1.msra.mxu0 0.0
        %688 = vmatprep.subr.mxu0 0.0
        %689 = vmatpush1.msra.mxu0 0.0
        %690 = vmatprep.subr.mxu0 0.0
        %691 = vmatpush1.msra.mxu0 0.0
        %692 = vmatprep.subr.mxu0 0.0
        %693 = vmatpush1.msra.mxu0 0.0
        %694 = vmatprep.subr.mxu0 0.0
        %695 = vmatpush1.msra.mxu0 0.0
        %696 = vmatprep.subr.mxu0 0.0
        %697 = vmatpush1.msra.mxu0 0.0
        %698 = vmatprep.subr.mxu0 0.0
        %699 = vmatpush1.msra.mxu0 0.0
        %700 = vmatprep.subr.mxu0 0.0
        %701 = vmatpush1.msra.mxu0 0.0
        %702 = vmatprep.subr.mxu0 0.0
        %703 = vmatpush1.msra.mxu0 0.0
        %704 = vmatprep.subr.mxu0 0.0
        %705 = vmatpush1.msra.mxu0 0.0
        %706 = vmatprep.subr.mxu0 0.0
        %707 = vmatpush1.msra.mxu0 0.0
        %708 = vmatprep.subr.mxu0 0.0
        %709 = vmatpush1.msra.mxu0 0.0
        %710 = vmatprep.subr.mxu0 0.0
        %711 = vmatpush1.msra.mxu0 0.0
        %712 = vmatprep.subr.mxu0 0.0
        %713 = vmatpush1.msra.mxu0 0.0
        %714 = vmatprep.subr.mxu0 0.0
        %715 = vmatpush1.msra.mxu0 0.0
        %716 = vmatprep.subr.mxu0 0.0
        %717 = vmatpush1.msra.mxu0 0.0
        %718 = vmatprep.subr.mxu0 0.0
        %719 = vmatpush1.msra.mxu0 0.0
        %720 = vmatprep.mubr.f32.mxu0 0.0
        %721 = vmatmul.mubr.f32.gmra.mrb[0].mxu0 %v654
        %v722 = vpop.f32.mrb[0].mxu0
        %v723 = vadd.f32 %v650, %v722
        %v724 = vpop.f32.mrb[0].mxu0
        %725 = vdwg.mxu0
        %v726 = vadd.f32 %v723, %v549
        %v727 = vsel %vm445, %v726, 0.0
        %728 = vadd.xlane.f32.xlu0 %v727
        %v729 = vpop.xlane.xlu0 %728
        %v730 = vmul.f32 %v729, 0.03125
        %v731 = vmul.f32 %v726, %v726
        %v732 = vsel %vm445, %v731, 0.0
        %733 = vadd.xlane.f32.xlu0 %v732
        %v734 = vpop.xlane.xlu0 %733
        %v735 = vmul.f32 %v734, 0.03125
        %v736 = vmul.f32 %v730, %v730
        %v737 = vsub.f32 %v735, %v736
        %v738 = vmax.f32 %v737, 0.0
        %v739 = vadd.f32 %v738, 1e-12
        %v740 = vrsqrt.pop %v739
        %v741 = vsub.f32 %v726, %v730
        %v742 = vmul.f32 %v741, %v740
        %v744 = vlaneseq
        %v745 = vshrl.u32 %v744, 7
        %v746 = vsub.s32 0, %v745
        %v747 = vrot.slane %v431, %v746
        %v749 = vmul.f32 %v742, %v747
        %v751 = vlaneseq
        %v752 = vshrl.u32 %v751, 7
        %v753 = vsub.s32 0, %v752
        %v754 = vrot.slane %v432, %v753
        %v756 = vadd.f32 %v749, %v754
        %757 = vst.msk [vmem:[%s417] sm:$0xff] %vm445, %v756
        %s758 = sand.u32 %s296, 1
        %s759 = scalar_lea.sflag [#allocation3], %s758
        %s760 = sand.u32 %s296, 1
        %s761 = smul.addr %s760, 8
        %s762 = scalar_lea.vmem [#allocation2], %s761
        // Predicated region
        $region69: #{tpu_custom_call.1} parent=67 // pred_check
          %p763 = pneg %p306
        $region70: #{tpu_custom_call.1} parent=67 // pred_check_branch
          %765 = sbr.rel (%p763) target = $region72
        $region71: #{tpu_custom_call.1} parent=67 // pred_region
          %s767 = ssub.s32 128, 128
          %768 = vsyncadd %s759, %s767
          %s769 = smul.addr %s26, 128
          %s770 = scalar_lea.hbm %s12, %s769
          %s772 = sshll.u32 %s762, 4
          %s773 = int_to_ptr.vmem [resolvable:$true] %s772
          %775 = dma.vmem_to_hbm [thread:$0]  %s773, 128, %s770, %s759
        $region72: #{tpu_custom_call.1} parent=67 // pred_fallthru
          _
      $region68: #{tpu_custom_call.1} parent=5 // pred_fallthru
        _
      %p776 = scmp.le.s32.totalorder 2, %s21
      // Predicated region
      $region73: #{tpu_custom_call.1} parent=5 // pred_check
        %p777 = pneg %p776
      $region74: #{tpu_custom_call.1} parent=5 // pred_check_branch
        %779 = sbr.rel (%p777) target = $region76
      $region75: #{tpu_custom_call.1} parent=5 // pred_region
        %s780 = ssub.s32 %s21, 2
        // Predicated region
        $region77: #{tpu_custom_call.1} parent=75 // pred_check
          %p781 = pneg %p312
        $region78: #{tpu_custom_call.1} parent=75 // pred_check_branch
          %783 = sbr.rel (%p781) target = $region80
        $region79: #{tpu_custom_call.1} parent=75 // pred_region
          %s784 = sand.u32 %s297, 1
          %s785 = scalar_lea.sflag [#allocation3], %s784
          %s786 = sand.u32 %s297, 1
          %s787 = smul.addr %s786, 8
          %s788 = scalar_lea.vmem [#allocation2], %s787
          %789 = dma.done %s785, 128
        $region80: #{tpu_custom_call.1} parent=75 // pred_fallthru
          _
      $region76: #{tpu_custom_call.1} parent=5 // pred_fallthru
        _
    $region6: #{tpu_custom_call.1} parent=1 // loop_footer
      %s25 = sadd.s32 1, %s21
    $region7: #{tpu_custom_call.1} parent=1 // loop_footer_branch
      %20 = sbr.rel target = $region3
    $region8: #{tpu_custom_call.1} parent=1 // loop_exit
      _
    %790 = vsyncpa [#allocation3], 1
    %s791 = scalar_lea.sflag [#allocation3], 1
    %792 = vsyncpa %s791, 1

// kernel: tpu_custom_call.1
$region0: #{tpu_custom_call.1}
  #allocation0 [shape = 'u32[]', space=smem, size = 0x4, offset = 0x4, fixed_abs, tag = 'smem constant byte address 0x4 - core index']
  #allocation1 [shape = 'u32[144,128]{1,0:T(1,128)}', space=vmem, size = 0x12000, scoped, tag = 'internal scratch']
  %s0 = inlined_call_operand.vmem [shape: f32[16,32], index: 0, kind: input, shape index: {}]
  %s1 = inlined_call_operand.vmem [shape: f32[16,32], index: 1, kind: input, shape index: {}]
  %s2 = inlined_call_operand.vmem [shape: f32[32,32], index: 2, kind: input, shape index: {}]
  %s3 = inlined_call_operand.vmem [shape: f32[1,32], index: 3, kind: input, shape index: {}]
  %s4 = inlined_call_operand.vmem [shape: f32[1,32], index: 4, kind: input, shape index: {}]
  %s5 = inlined_call_operand.vmem [shape: f32[1,32], index: 5, kind: input, shape index: {}]
  %s6 = inlined_call_operand.vmem [shape: f32[32,64], index: 6, kind: input, shape index: {}]
  %s7 = inlined_call_operand.vmem [shape: f32[1,64], index: 7, kind: input, shape index: {}]
  %s8 = inlined_call_operand.vmem [shape: f32[64,32], index: 8, kind: input, shape index: {}]
  %s9 = inlined_call_operand.vmem [shape: f32[1,32], index: 9, kind: input, shape index: {}]
  %s10 = inlined_call_operand.vmem [shape: f32[1,32], index: 10, kind: input, shape index: {}]
  %s11 = inlined_call_operand.vmem [shape: f32[1,32], index: 11, kind: input, shape index: {}]
  %s12 = inlined_call_operand.hbm [shape: f32[16,32], index: 12, kind: output, shape index: {}]
  %s13 = sld [smem:[#allocation0]]
  $region81: #{tpu_custom_call.1} parent=0
    _
  %s15 = ssub.s32 1, %s13
  %s16 = scalar_select 0, %s15, %s13
  $region1: #{tpu_custom_call.1} parent=0
    #allocation2 [shape = 'u8[8192]{0}', space=vmem, size = 0x2000, scoped, tag = 'output window, operand 0']
    #allocation3 [shape = 's32[2]{0}', space=sflag, size = 0x8, scoped, tag = 'scoped memory for tpu_custom_call.1']
    %17 = vsyncpa [#allocation3], 0
    %s18 = scalar_lea.sflag [#allocation3], 1
    %19 = vsyncpa %s18, 0
    loop: start=0, step=1, limit=4
    $region2: #{tpu_custom_call.1} parent=1 // loop_pre_header
      _
    $region3: #{tpu_custom_call.1} parent=1 // loop_header
      %s21 = sphi 0, %s25
      %p22 = scmp.ge.s32.totalorder %s21, 4
      %s31 = sphi 0, %s33
      %s34 = sphi 0, %s31
      %s35 = sphi 0, %s34
      %s51 = sphi 0, %s35
      %s57 = sphi 0, %s59
      %s60 = sphi 0, %s57
      %s61 = sphi 0, %s60
      %s77 = sphi 0, %s61
      %s81 = sphi 0, %s81
      %s83 = sphi 0, %s81
      %s84 = sphi 0, %s83
      %s98 = sphi 0, %s84
      %s102 = sphi 0, %s102
      %s104 = sphi 0, %s102
      %s105 = sphi 0, %s104
      %s119 = sphi 0, %s105
      %s123 = sphi 0, %s123
      %s125 = sphi 0, %s123
      %s126 = sphi 0, %s125
      %s140 = sphi 0, %s126
      %s144 = sphi 0, %s144
      %s146 = sphi 0, %s144
      %s147 = sphi 0, %s146
      %s161 = sphi 0, %s147
      %s165 = sphi 0, %s165
      %s167 = sphi 0, %s165
      %s168 = sphi 0, %s167
      %s182 = sphi 0, %s168
      %s186 = sphi 0, %s186
      %s188 = sphi 0, %s186
      %s189 = sphi 0, %s188
      %s203 = sphi 0, %s189
      %s207 = sphi 0, %s207
      %s209 = sphi 0, %s207
      %s210 = sphi 0, %s209
      %s224 = sphi 0, %s210
      %s228 = sphi 0, %s228
      %s230 = sphi 0, %s228
      %s231 = sphi 0, %s230
      %s245 = sphi 0, %s231
      %s249 = sphi 0, %s249
      %s251 = sphi 0, %s249
      %s252 = sphi 0, %s251
      %s266 = sphi 0, %s252
      %s270 = sphi 0, %s270
      %s272 = sphi 0, %s270
      %s273 = sphi 0, %s272
      %s287 = sphi 0, %s273
      %s293 = sphi 0, %s295
      %s296 = sphi 0, %s293
      %s297 = sphi 0, %s296
      %s313 = sphi 0, %s297
    $region4: #{tpu_custom_call.1} parent=1 // loop_header_branch
      %24 = sbr.rel (%p22) target = $region8
    $region5: #{tpu_custom_call.1} parent=1 // loop_body
      %s26 = ssub.s32 %s21, 1
      %s27 = ssub.s32 %s21, 2
      %s28 = sadd.s32 %s21, 1
      %s29 = ssub.s32 %s21, %s28
      %p30 = scmp.eq.s32.totalorder %s29, 0
      %s32 = sadd.s32 %s31, 1
      %s33 = scalar_select %p30, %s31, %s32
      %p36 = pneg %p30
      %p37 = scmp.eq.s32.totalorder %s21, 1
      %p38 = por %p36, %p37
      %p39 = scmp.ne.s32.totalorder %s31, %s34
      %p40 = scmp.eq.s32.totalorder %s21, 0
      %p41 = por %p39, %p40
      %p42 = scmp.ne.s32.totalorder %s31, %s34
      %p43 = scmp.eq.s32.totalorder %s26, 1
      %p44 = por %p42, %p43
      %p45 = scmp.ne.s32.totalorder %s34, %s35
      %p46 = scmp.eq.s32.totalorder %s26, 0
      %p47 = por %p45, %p46
      %p48 = scmp.ne.s32.totalorder %s34, %s35
      %p49 = scmp.eq.s32.totalorder %s27, 1
      %p50 = por %p48, %p49
      %p52 = scmp.ne.s32.totalorder %s35, %s51
      %p53 = scmp.eq.s32.totalorder %s27, 0
      %p54 = por %p52, %p53
      %s55 = ssub.s32 %s21, %s28
      %p56 = scmp.eq.s32.totalorder %s55, 0
      %s58 = sadd.s32 %s57, 1
      %s59 = scalar_select %p56, %s57, %s58
      %p62 = pneg %p56
      %p63 = scmp.eq.s32.totalorder %s21, 1
      %p64 = por %p62, %p63
      %p65 = scmp.ne.s32.totalorder %s57, %s60
      %p66 = scmp.eq.s32.totalorder %s21, 0
      %p67 = por %p65, %p66
      %p68 = scmp.ne.s32.totalorder %s57, %s60
      %p69 = scmp.eq.s32.totalorder %s26, 1
      %p70 = por %p68, %p69
      %p71 = scmp.ne.s32.totalorder %s60, %s61
      %p72 = scmp.eq.s32.totalorder %s26, 0
      %p73 = por %p71, %p72
      %p74 = scmp.ne.s32.totalorder %s60, %s61
      %p75 = scmp.eq.s32.totalorder %s27, 1
      %p76 = por %p74, %p75
      %p78 = scmp.ne.s32.totalorder %s61, %s77
      %p79 = scmp.eq.s32.totalorder %s27, 0
      %p80 = por %p78, %p79
      %s82 = sadd.s32 %s81, 1
      %p85 = scmp.eq.s32.totalorder %s21, 1
      %p86 = scmp.ne.s32.totalorder %s81, %s83
      %p87 = scmp.eq.s32.totalorder %s21, 0
      %p88 = por %p86, %p87
      %p89 = scmp.ne.s32.totalorder %s81, %s83
      %p90 = scmp.eq.s32.totalorder %s26, 1
      %p91 = por %p89, %p90
      %p92 = scmp.ne.s32.totalorder %s83, %s84
      %p93 = scmp.eq.s32.totalorder %s26, 0
      %p94 = por %p92, %p93
      %p95 = scmp.ne.s32.totalorder %s83, %s84
      %p96 = scmp.eq.s32.totalorder %s27, 1
      %p97 = por %p95, %p96
      %p99 = scmp.ne.s32.totalorder %s84, %s98
      %p100 = scmp.eq.s32.totalorder %s27, 0
      %p101 = por %p99, %p100
      %s103 = sadd.s32 %s102, 1
      %p106 = scmp.eq.s32.totalorder %s21, 1
      %p107 = scmp.ne.s32.totalorder %s102, %s104
      %p108 = scmp.eq.s32.totalorder %s21, 0
      %p109 = por %p107, %p108
      %p110 = scmp.ne.s32.totalorder %s102, %s104
      %p111 = scmp.eq.s32.totalorder %s26, 1
      %p112 = por %p110, %p111
      %p113 = scmp.ne.s32.totalorder %s104, %s105
      %p114 = scmp.eq.s32.totalorder %s26, 0
      %p115 = por %p113, %p114
      %p116 = scmp.ne.s32.totalorder %s104, %s105
      %p117 = scmp.eq.s32.totalorder %s27, 1
      %p118 = por %p116, %p117
      %p120 = scmp.ne.s32.totalorder %s105, %s119
      %p121 = scmp.eq.s32.totalorder %s27, 0
      %p122 = por %p120, %p121
      %s124 = sadd.s32 %s123, 1
      %p127 = scmp.eq.s32.totalorder %s21, 1
      %p128 = scmp.ne.s32.totalorder %s123, %s125
      %p129 = scmp.eq.s32.totalorder %s21, 0
      %p130 = por %p128, %p129
      %p131 = scmp.ne.s32.totalorder %s123, %s125
      %p132 = scmp.eq.s32.totalorder %s26, 1
      %p133 = por %p131, %p132
      %p134 = scmp.ne.s32.totalorder %s125, %s126
      %p135 = scmp.eq.s32.totalorder %s26, 0
      %p136 = por %p134, %p135
      %p137 = scmp.ne.s32.totalorder %s125, %s126
      %p138 = scmp.eq.s32.totalorder %s27, 1
      %p139 = por %p137, %p138
      %p141 = scmp.ne.s32.totalorder %s126, %s140
      %p142 = scmp.eq.s32.totalorder %s27, 0
      %p143 = por %p141, %p142
      %s145 = sadd.s32 %s144, 1
      %p148 = scmp.eq.s32.totalorder %s21, 1
      %p149 = scmp.ne.s32.totalorder %s144, %s146
      %p150 = scmp.eq.s32.totalorder %s21, 0
      %p151 = por %p149, %p150
      %p152 = scmp.ne.s32.totalorder %s144, %s146
      %p153 = scmp.eq.s32.totalorder %s26, 1
      %p154 = por %p152, %p153
      %p155 = scmp.ne.s32.totalorder %s146, %s147
      %p156 = scmp.eq.s32.totalorder %s26, 0
      %p157 = por %p155, %p156
      %p158 = scmp.ne.s32.totalorder %s146, %s147
      %p159 = scmp.eq.s32.totalorder %s27, 1
      %p160 = por %p158, %p159
      %p162 = scmp.ne.s32.totalorder %s147, %s161
      %p163 = scmp.eq.s32.totalorder %s27, 0
      %p164 = por %p162, %p163
      %s166 = sadd.s32 %s165, 1
      %p169 = scmp.eq.s32.totalorder %s21, 1
      %p170 = scmp.ne.s32.totalorder %s165, %s167
      %p171 = scmp.eq.s32.totalorder %s21, 0
      %p172 = por %p170, %p171
      %p173 = scmp.ne.s32.totalorder %s165, %s167
      %p174 = scmp.eq.s32.totalorder %s26, 1
      %p175 = por %p173, %p174
      %p176 = scmp.ne.s32.totalorder %s167, %s168
      %p177 = scmp.eq.s32.totalorder %s26, 0
      %p178 = por %p176, %p177
      %p179 = scmp.ne.s32.totalorder %s167, %s168
      %p180 = scmp.eq.s32.totalorder %s27, 1
      %p181 = por %p179, %p180
      %p183 = scmp.ne.s32.totalorder %s168, %s182
      %p184 = scmp.eq.s32.totalorder %s27, 0
      %p185 = por %p183, %p184
      %s187 = sadd.s32 %s186, 1
      %p190 = scmp.eq.s32.totalorder %s21, 1
      %p191 = scmp.ne.s32.totalorder %s186, %s188
      %p192 = scmp.eq.s32.totalorder %s21, 0
      %p193 = por %p191, %p192
      %p194 = scmp.ne.s32.totalorder %s186, %s188
      %p195 = scmp.eq.s32.totalorder %s26, 1
      %p196 = por %p194, %p195
      %p197 = scmp.ne.s32.totalorder %s188, %s189
      %p198 = scmp.eq.s32.totalorder %s26, 0
      %p199 = por %p197, %p198
      %p200 = scmp.ne.s32.totalorder %s188, %s189
      %p201 = scmp.eq.s32.totalorder %s27, 1
      %p202 = por %p200, %p201
      %p204 = scmp.ne.s32.totalorder %s189, %s203
      %p205 = scmp.eq.s32.totalorder %s27, 0
      %p206 = por %p204, %p205
      %s208 = sadd.s32 %s207, 1
      %p211 = scmp.eq.s32.totalorder %s21, 1
      %p212 = scmp.ne.s32.totalorder %s207, %s209
      %p213 = scmp.eq.s32.totalorder %s21, 0
      %p214 = por %p212, %p213
      %p215 = scmp.ne.s32.totalorder %s207, %s209
      %p216 = scmp.eq.s32.totalorder %s26, 1
      %p217 = por %p215, %p216
      %p218 = scmp.ne.s32.totalorder %s209, %s210
      %p219 = scmp.eq.s32.totalorder %s26, 0
      %p220 = por %p218, %p219
      %p221 = scmp.ne.s32.totalorder %s209, %s210
      %p222 = scmp.eq.s32.totalorder %s27, 1
      %p223 = por %p221, %p222
      %p225 = scmp.ne.s32.totalorder %s210, %s224
      %p226 = scmp.eq.s32.totalorder %s27, 0
      %p227 = por %p225, %p226
      %s229 = sadd.s32 %s228, 1
      %p232 = scmp.eq.s32.totalorder %s21, 1
      %p233 = scmp.ne.s32.totalorder %s228, %s230
      %p234 = scmp.eq.s32.totalorder %s21, 0
      %p235 = por %p233, %p234
      %p236 = scmp.ne.s32.totalorder %s228, %s230
      %p237 = scmp.eq.s32.totalorder %s26, 1
      %p238 = por %p236, %p237
      %p239 = scmp.ne.s32.totalorder %s230, %s231
      %p240 = scmp.eq.s32.totalorder %s26, 0
      %p241 = por %p239, %p240
      %p242 = scmp.ne.s32.totalorder %s230, %s231
      %p243 = scmp.eq.s32.totalorder %s27, 1
      %p244 = por %p242, %p243
      %p246 = scmp.ne.s32.totalorder %s231, %s245
      %p247 = scmp.eq.s32.totalorder %s27, 0
      %p248 = por %p246, %p247
      %s250 = sadd.s32 %s249, 1
      %p253 = scmp.eq.s32.totalorder %s21, 1
      %p254 = scmp.ne.s32.totalorder %s249, %s251
      %p255 = scmp.eq.s32.totalorder %s21, 0
      %p256 = por %p254, %p255
      %p257 = scmp.ne.s32.totalorder %s249, %s251
      %p258 = scmp.eq.s32.totalorder %s26, 1
      %p259 = por %p257, %p258
      %p260 = scmp.ne.s32.totalorder %s251, %s252
      %p261 = scmp.eq.s32.totalorder %s26, 0
      %p262 = por %p260, %p261
      %p263 = scmp.ne.s32.totalorder %s251, %s252
      %p264 = scmp.eq.s32.totalorder %s27, 1
      %p265 = por %p263, %p264
      %p267 = scmp.ne.s32.totalorder %s252, %s266
      %p268 = scmp.eq.s32.totalorder %s27, 0
      %p269 = por %p267, %p268
      %s271 = sadd.s32 %s270, 1
      %p274 = scmp.eq.s32.totalorder %s21, 1
      %p275 = scmp.ne.s32.totalorder %s270, %s272
      %p276 = scmp.eq.s32.totalorder %s21, 0
      %p277 = por %p275, %p276
      %p278 = scmp.ne.s32.totalorder %s270, %s272
      %p279 = scmp.eq.s32.totalorder %s26, 1
      %p280 = por %p278, %p279
      %p281 = scmp.ne.s32.totalorder %s272, %s273
      %p282 = scmp.eq.s32.totalorder %s26, 0
      %p283 = por %p281, %p282
      %p284 = scmp.ne.s32.totalorder %s272, %s273
      %p285 = scmp.eq.s32.totalorder %s27, 1
      %p286 = por %p284, %p285
      %p288 = scmp.ne.s32.totalorder %s273, %s287
      %p289 = scmp.eq.s32.totalorder %s27, 0
      %p290 = por %p288, %p289
      %s291 = ssub.s32 %s21, %s28
      %p292 = scmp.eq.s32.totalorder %s291, 0
      %s294 = sadd.s32 %s293, 1
      %s295 = scalar_select %p292, %s293, %s294
      %p298 = pneg %p292
      %p299 = scmp.eq.s32.totalorder %s21, 1
      %p300 = por %p298, %p299
      %p301 = scmp.ne.s32.totalorder %s293, %s296
      %p302 = scmp.eq.s32.totalorder %s21, 0
      %p303 = por %p301, %p302
      %p304 = scmp.ne.s32.totalorder %s293, %s296
      %p305 = scmp.eq.s32.totalorder %s26, 1
      %p306 = por %p304, %p305
      %p307 = scmp.ne.s32.totalorder %s296, %s297
      %p308 = scmp.eq.s32.totalorder %s26, 0
      %p309 = por %p307, %p308
      %p310 = scmp.ne.s32.totalorder %s296, %s297
      %p311 = scmp.eq.s32.totalorder %s27, 1
      %p312 = por %p310, %p311
      %p314 = scmp.ne.s32.totalorder %s297, %s313
      %p315 = scmp.eq.s32.totalorder %s27, 0
      %p316 = por %p314, %p315
      %p317 = scmp.le.s32.totalorder 1, %s21
      %p318 = scmp.lt.s32.totalorder %s21, 3
      %p319 = pnand %p317, %p318
      %p320 = pneg %p319
      // Predicated region
      $region9: #{tpu_custom_call.1} parent=5 // pred_check
        _
      $region10: #{tpu_custom_call.1} parent=5 // pred_check_branch
        %322 = sbr.rel (%p319) target = $region12
      $region11: #{tpu_custom_call.1} parent=5 // pred_region
        %s323 = ssub.s32 %s21, 1
        // Predicated region
        $region13: #{tpu_custom_call.1} parent=11 // pred_check
          %p324 = pneg %p94
        $region14: #{tpu_custom_call.1} parent=11 // pred_check_branch
          %326 = sbr.rel (%p324) target = $region16
        $region15: #{tpu_custom_call.1} parent=11 // pred_region
          _
        $region16: #{tpu_custom_call.1} parent=11 // pred_fallthru
          _
        // Predicated region
        $region17: #{tpu_custom_call.1} parent=11 // pred_check
          %p327 = pneg %p115
        $region18: #{tpu_custom_call.1} parent=11 // pred_check_branch
          %329 = sbr.rel (%p327) target = $region20
        $region19: #{tpu_custom_call.1} parent=11 // pred_region
          _
        $region20: #{tpu_custom_call.1} parent=11 // pred_fallthru
          _
        // Predicated region
        $region21: #{tpu_custom_call.1} parent=11 // pred_check
          %p330 = pneg %p136
        $region22: #{tpu_custom_call.1} parent=11 // pred_check_branch
          %332 = sbr.rel (%p330) target = $region24
        $region23: #{tpu_custom_call.1} parent=11 // pred_region
          _
        $region24: #{tpu_custom_call.1} parent=11 // pred_fallthru
          _
        // Predicated region
        $region25: #{tpu_custom_call.1} parent=11 // pred_check
          %p333 = pneg %p157
        $region26: #{tpu_custom_call.1} parent=11 // pred_check_branch
          %335 = sbr.rel (%p333) target = $region28
        $region27: #{tpu_custom_call.1} parent=11 // pred_region
          _
        $region28: #{tpu_custom_call.1} parent=11 // pred_fallthru
          _
        // Predicated region
        $region29: #{tpu_custom_call.1} parent=11 // pred_check
          %p336 = pneg %p178
        $region30: #{tpu_custom_call.1} parent=11 // pred_check_branch
          %338 = sbr.rel (%p336) target = $region32
        $region31: #{tpu_custom_call.1} parent=11 // pred_region
          _
        $region32: #{tpu_custom_call.1} parent=11 // pred_fallthru
          _
        // Predicated region
        $region33: #{tpu_custom_call.1} parent=11 // pred_check
          %p339 = pneg %p199
        $region34: #{tpu_custom_call.1} parent=11 // pred_check_branch
          %341 = sbr.rel (%p339) target = $region36
        $region35: #{tpu_custom_call.1} parent=11 // pred_region
          _
        $region36: #{tpu_custom_call.1} parent=11 // pred_fallthru
          _
        // Predicated region
        $region37: #{tpu_custom_call.1} parent=11 // pred_check
          %p342 = pneg %p220
        $region38: #{tpu_custom_call.1} parent=11 // pred_check_branch
          %344 = sbr.rel (%p342) target = $region40
        $region39: #{tpu_custom_call.1} parent=11 // pred_region
          _
        $region40: #{tpu_custom_call.1} parent=11 // pred_fallthru
          _
        // Predicated region
        $region41: #{tpu_custom_call.1} parent=11 // pred_check
          %p345 = pneg %p241
        $region42: #{tpu_custom_call.1} parent=11 // pred_check_branch
          %347 = sbr.rel (%p345) target = $region44
        $region43: #{tpu_custom_call.1} parent=11 // pred_region
          _
        $region44: #{tpu_custom_call.1} parent=11 // pred_fallthru
          _
        // Predicated region
        $region45: #{tpu_custom_call.1} parent=11 // pred_check
          %p348 = pneg %p262
        $region46: #{tpu_custom_call.1} parent=11 // pred_check_branch
          %350 = sbr.rel (%p348) target = $region48
        $region47: #{tpu_custom_call.1} parent=11 // pred_region
          _
        $region48: #{tpu_custom_call.1} parent=11 // pred_fallthru
          _
        // Predicated region
        $region49: #{tpu_custom_call.1} parent=11 // pred_check
          %p351 = pneg %p283
        $region50: #{tpu_custom_call.1} parent=11 // pred_check_branch
          %353 = sbr.rel (%p351) target = $region52
        $region51: #{tpu_custom_call.1} parent=11 // pred_region
          _
        $region52: #{tpu_custom_call.1} parent=11 // pred_fallthru
          _
      $region12: #{tpu_custom_call.1} parent=5 // pred_fallthru
        _
      %p354 = scmp.lt.s32.totalorder %s21, 2
      // Predicated region
      $region53: #{tpu_custom_call.1} parent=5 // pred_check
        %p355 = pneg %p354
      $region54: #{tpu_custom_call.1} parent=5 // pred_check_branch
        %357 = sbr.rel (%p355) target = $region56
      $region55: #{tpu_custom_call.1} parent=5 // pred_region
        // Predicated region
        $region57: #{tpu_custom_call.1} parent=55 // pred_check
          %p358 = pneg %p41
        $region58: #{tpu_custom_call.1} parent=55 // pred_check_branch
          %360 = sbr.rel (%p358) target = $region60
        $region59: #{tpu_custom_call.1} parent=55 // pred_region
          %p361 = scmp.lt.s32.totalorder %s21, 1
          %s362 = scalar_select %p361, %s21, 1
          %s363 = smul.addr %s362, 8
          %s364 = scalar_lea.vmem %s0, %s363
        $region60: #{tpu_custom_call.1} parent=55 // pred_fallthru
          _
        // Predicated region
        $region61: #{tpu_custom_call.1} parent=55 // pred_check
          %p365 = pneg %p67
        $region62: #{tpu_custom_call.1} parent=55 // pred_check_branch
          %367 = sbr.rel (%p365) target = $region64
        $region63: #{tpu_custom_call.1} parent=55 // pred_region
          %p368 = scmp.lt.s32.totalorder %s21, 1
          %s369 = scalar_select %p368, %s21, 1
          %s370 = smul.addr %s369, 8
          %s371 = scalar_lea.vmem %s1, %s370
        $region64: #{tpu_custom_call.1} parent=55 // pred_fallthru
          _
      $region56: #{tpu_custom_call.1} parent=5 // pred_fallthru
        _
      %p372 = scmp.le.s32.totalorder 1, %s21
      %p373 = scmp.lt.s32.totalorder %s21, 3
      %p374 = pnand %p372, %p373
      %p375 = pneg %p374
      // Predicated region
      $region65: #{tpu_custom_call.1} parent=5 // pred_check
        _
      $region66: #{tpu_custom_call.1} parent=5 // pred_check_branch
        %377 = sbr.rel (%p374) target = $region68
      $region67: #{tpu_custom_call.1} parent=5 // pred_region
        %s378 = ssub.s32 %s21, 1
        %p379 = scmp.lt.s32.totalorder %s26, 1
        %s380 = scalar_select %p379, %s26, 1
        %s381 = smul.addr %s380, 8
        %s382 = scalar_lea.vmem %s0, %s381
        %p383 = pneg %p47
        %p384 = pneg %p44
        %p385 = scmp.lt.s32.totalorder %s26, 1
        %s386 = scalar_select %p385, %s26, 1
        %s387 = smul.addr %s386, 8
        %s388 = scalar_lea.vmem %s1, %s387
        %p389 = pneg %p73
        %p390 = pneg %p70
        %p391 = pneg %p94
        %p392 = pneg %p91
        %p393 = pneg %p115
        %p394 = pneg %p112
        %p395 = pneg %p136
        %p396 = pneg %p133
        %p397 = pneg %p157
        %p398 = pneg %p154
        %p399 = pneg %p178
        %p400 = pneg %p175
        %p401 = pneg %p199
        %p402 = pneg %p196
        %p403 = pneg %p220
        %p404 = pneg %p217
        %p405 = pneg %p241
        %p406 = pneg %p238
        %p407 = pneg %p262
        %p408 = pneg %p259
        %p409 = pneg %p283
        %p410 = pneg %p280
        %p411 = pneg %p309
        %p412 = pneg %p306
        %s413 = sand.u32 %s296, 1
        %s414 = scalar_lea.sflag [#allocation3], %s413
        %s415 = sand.u32 %s296, 1
        %s416 = smul.addr %s415, 8
        %s417 = scalar_lea.vmem [#allocation2], %s416
        %p418 = scmp.lt.s32.totalorder %s26, 1
        %s419 = scalar_select %p418, %s26, 1
        %s420 = smul.addr %s419, 8
        %s421 = scalar_lea.vmem %s0, %s420
        %p422 = scmp.lt.s32.totalorder %s26, 1
        %s423 = scalar_select %p422, %s26, 1
        %s424 = smul.addr %s423, 8
        %s425 = scalar_lea.vmem %s1, %s424
        %v426 = vld [vmem:[%s3] sm:$0x1]
        %v427 = vld [vmem:[%s4] sm:$0x1]
        %v428 = vld [vmem:[%s5] sm:$0x1]
        %v429 = vld [vmem:[%s7] sm:$0x1]
        %v430 = vld [vmem:[%s9] sm:$0x1]
        %v431 = vld [vmem:[%s10] sm:$0x1]
        %v432 = vld [vmem:[%s11] sm:$0x1]
        %v433 = vld [vmem:[%s421] sm:$0xff]
        %v434 = vld [vmem:[%s425] sm:$0xff]
        %v435 = vld [vmem:[%s2] sm:$0xff]
        %v436 = vld [vmem:[%s2 + $0x8] sm:$0xff]
        %v437 = vld [vmem:[%s2 + $0x10] sm:$0xff]
        %v438 = vld [vmem:[%s2 + $0x18] sm:$0xff]
        %v440 = vlaneseq
        %v441 = vshrl.u32 %v440, 7
        %v442 = vsub.s32 0, %v441
        %v443 = vrot.slane %v426, %v442
        %vm445 = vcmask 261120
        %v447 = vsel %vm445, %v433, 0
        %449 = vmatprep.subr.mxu0 0.0
        %450 = vmatpush1.msra.mxu0 %v435
        %451 = vmatprep.subr.mxu0 0.0
        %452 = vmatpush1.msra.mxu0 %v436
        %453 = vmatprep.subr.mxu0 0.0
        %454 = vmatpush1.msra.mxu0 %v437
        %455 = vmatprep.subr.mxu0 0.0
        %456 = vmatpush1.msra.mxu0 %v438
        %457 = vmatprep.subr.mxu0 0.0
        %458 = vmatpush1.msra.mxu0 0.0
        %459 = vmatprep.subr.mxu0 0.0
        %460 = vmatpush1.msra.mxu0 0.0
        %461 = vmatprep.subr.mxu0 0.0
        %462 = vmatpush1.msra.mxu0 0.0
        %463 = vmatprep.subr.mxu0 0.0
        %464 = vmatpush1.msra.mxu0 0.0
        %465 = vmatprep.subr.mxu0 0.0
        %466 = vmatpush1.msra.mxu0 0.0
        %467 = vmatprep.subr.mxu0 0.0
        %468 = vmatpush1.msra.mxu0 0.0
        %469 = vmatprep.subr.mxu0 0.0
        %470 = vmatpush1.msra.mxu0 0.0
        %471 = vmatprep.subr.mxu0 0.0
        %472 = vmatpush1.msra.mxu0 0.0
        %473 = vmatprep.subr.mxu0 0.0
        %474 = vmatpush1.msra.mxu0 0.0
        %475 = vmatprep.subr.mxu0 0.0
        %476 = vmatpush1.msra.mxu0 0.0
        %477 = vmatprep.subr.mxu0 0.0
        %478 = vmatpush1.msra.mxu0 0.0
        %479 = vmatprep.subr.mxu0 0.0
        %480 = vmatpush1.msra.mxu0 0.0
        %481 = vmatprep.subr.mxu0 0.0
        %482 = vmatpush1.msra.mxu0 0.0
        %483 = vmatprep.subr.mxu0 0.0
        %484 = vmatpush1.msra.mxu0 0.0
        %485 = vmatprep.subr.mxu0 0.0
        %486 = vmatpush1.msra.mxu0 0.0
        %487 = vmatprep.subr.mxu0 0.0
        %488 = vmatpush1.msra.mxu0 0.0
        %489 = vmatprep.subr.mxu0 0.0
        %490 = vmatpush1.msra.mxu0 0.0
        %491 = vmatprep.subr.mxu0 0.0
        %492 = vmatpush1.msra.mxu0 0.0
        %493 = vmatprep.subr.mxu0 0.0
        %494 = vmatpush1.msra.mxu0 0.0
        %495 = vmatprep.subr.mxu0 0.0
        %496 = vmatpush1.msra.mxu0 0.0
        %497 = vmatprep.subr.mxu0 0.0
        %498 = vmatpush1.msra.mxu0 0.0
        %499 = vmatprep.subr.mxu0 0.0
        %500 = vmatpush1.msra.mxu0 0.0
        %501 = vmatprep.subr.mxu0 0.0
        %502 = vmatpush1.msra.mxu0 0.0
        %503 = vmatprep.subr.mxu0 0.0
        %504 = vmatpush1.msra.mxu0 0.0
        %505 = vmatprep.subr.mxu0 0.0
        %506 = vmatpush1.msra.mxu0 0.0
        %507 = vmatprep.subr.mxu0 0.0
        %508 = vmatpush1.msra.mxu0 0.0
        %509 = vmatprep.subr.mxu0 0.0
        %510 = vmatpush1.msra.mxu0 0.0
        %511 = vmatprep.subr.mxu0 0.0
        %512 = vmatpush1.msra.mxu0 0.0
        %513 = vmatprep.mubr.f32.mxu0 0.0
        %514 = vmatmul.mubr.f32.gmra.mrb[0].mxu0 %v447
        %v515 = vpop.f32.mrb[0].mxu0
        %v516 = vadd.f32 %v443, %v515
        %v517 = vpop.f32.mrb[0].mxu0
        %518 = vdwg.mxu0
        %v519 = vadd.f32 %v516, %v434
        %v520 = vsel %vm445, %v519, 0.0
        %521 = vadd.xlane.f32.xlu0 %v520
        %v522 = vpop.xlane.xlu0 %521
        %v523 = vmul.f32 %v522, 0.03125
        %v524 = vmul.f32 %v519, %v519
        %v525 = vsel %vm445, %v524, 0.0
        %526 = vadd.xlane.f32.xlu0 %v525
        %v527 = vpop.xlane.xlu0 %526
        %v528 = vmul.f32 %v527, 0.03125
        %v529 = vmul.f32 %v523, %v523
        %v530 = vsub.f32 %v528, %v529
        %v531 = vmax.f32 %v530, 0.0
        %v532 = vadd.f32 %v531, 1e-12
        %v533 = vrsqrt.pop %v532
        %v534 = vsub.f32 %v519, %v523
        %v535 = vmul.f32 %v534, %v533
        %v537 = vlaneseq
        %v538 = vshrl.u32 %v537, 7
        %v539 = vsub.s32 0, %v538
        %v540 = vrot.slane %v427, %v539
        %v542 = vmul.f32 %v535, %v540
        %v544 = vlaneseq
        %v545 = vshrl.u32 %v544, 7
        %v546 = vsub.s32 0, %v545
        %v547 = vrot.slane %v428, %v546
        %v549 = vadd.f32 %v542, %v547
        %v550 = vld [vmem:[%s6] sm:$0xff]
        %v551 = vld [vmem:[%s6 + $0x8] sm:$0xff]
        %v552 = vld [vmem:[%s6 + $0x10] sm:$0xff]
        %v553 = vld [vmem:[%s6 + $0x18] sm:$0xff]
        %v555 = vlaneseq
        %v556 = vshrl.u32 %v555, 7
        %v557 = vsub.s32 0, %v556
        %v558 = vrot.slane %v429, %v557
        %v561 = vsel %vm445, %v549, 0
        %563 = vmatprep.subr.mxu0 0.0
        %564 = vmatpush1.msra.mxu0 %v550
        %565 = vmatprep.subr.mxu0 0.0
        %566 = vmatpush1.msra.mxu0 %v551
        %567 = vmatprep.subr.mxu0 0.0
        %568 = vmatpush1.msra.mxu0 %v552
        %569 = vmatprep.subr.mxu0 0.0
        %570 = vmatpush1.msra.mxu0 %v553
        %571 = vmatprep.subr.mxu0 0.0
        %572 = vmatpush1.msra.mxu0 0.0
        %573 = vmatprep.subr.mxu0 0.0
        %574 = vmatpush1.msra.mxu0 0.0
        %575 = vmatprep.subr.mxu0 0.0
        %576 = vmatpush1.msra.mxu0 0.0
        %577 = vmatprep.subr.mxu0 0.0
        %578 = vmatpush1.msra.mxu0 0.0
        %579 = vmatprep.subr.mxu0 0.0
        %580 = vmatpush1.msra.mxu0 0.0
        %581 = vmatprep.subr.mxu0 0.0
        %582 = vmatpush1.msra.mxu0 0.0
        %583 = vmatprep.subr.mxu0 0.0
        %584 = vmatpush1.msra.mxu0 0.0
        %585 = vmatprep.subr.mxu0 0.0
        %586 = vmatpush1.msra.mxu0 0.0
        %587 = vmatprep.subr.mxu0 0.0
        %588 = vmatpush1.msra.mxu0 0.0
        %589 = vmatprep.subr.mxu0 0.0
        %590 = vmatpush1.msra.mxu0 0.0
        %591 = vmatprep.subr.mxu0 0.0
        %592 = vmatpush1.msra.mxu0 0.0
        %593 = vmatprep.subr.mxu0 0.0
        %594 = vmatpush1.msra.mxu0 0.0
        %595 = vmatprep.subr.mxu0 0.0
        %596 = vmatpush1.msra.mxu0 0.0
        %597 = vmatprep.subr.mxu0 0.0
        %598 = vmatpush1.msra.mxu0 0.0
        %599 = vmatprep.subr.mxu0 0.0
        %600 = vmatpush1.msra.mxu0 0.0
        %601 = vmatprep.subr.mxu0 0.0
        %602 = vmatpush1.msra.mxu0 0.0
        %603 = vmatprep.subr.mxu0 0.0
        %604 = vmatpush1.msra.mxu0 0.0
        %605 = vmatprep.subr.mxu0 0.0
        %606 = vmatpush1.msra.mxu0 0.0
        %607 = vmatprep.subr.mxu0 0.0
        %608 = vmatpush1.msra.mxu0 0.0
        %609 = vmatprep.subr.mxu0 0.0
        %610 = vmatpush1.msra.mxu0 0.0
        %611 = vmatprep.subr.mxu0 0.0
        %612 = vmatpush1.msra.mxu0 0.0
        %613 = vmatprep.subr.mxu0 0.0
        %614 = vmatpush1.msra.mxu0 0.0
        %615 = vmatprep.subr.mxu0 0.0
        %616 = vmatpush1.msra.mxu0 0.0
        %617 = vmatprep.subr.mxu0 0.0
        %618 = vmatpush1.msra.mxu0 0.0
        %619 = vmatprep.subr.mxu0 0.0
        %620 = vmatpush1.msra.mxu0 0.0
        %621 = vmatprep.subr.mxu0 0.0
        %622 = vmatpush1.msra.mxu0 0.0
        %623 = vmatprep.subr.mxu0 0.0
        %624 = vmatpush1.msra.mxu0 0.0
        %625 = vmatprep.subr.mxu0 0.0
        %626 = vmatpush1.msra.mxu0 0.0
        %627 = vmatprep.mubr.f32.mxu0 0.0
        %628 = vmatmul.mubr.f32.gmra.mrb[0].mxu0 %v561
        %v629 = vpop.f32.mrb[0].mxu0
        %v630 = vadd.f32 %v558, %v629
        %v631 = vpop.f32.mrb[0].mxu0
        %632 = vdwg.mxu0
        %v633 = vmul.f32 %v630, 0.5
        %v634 = vmul.f32 %v630, 0.70710677
        %v635 = verf.f32.pop %v634
        %v636 = vadd.f32 %v635, 1.0
        %v637 = vmul.f32 %v633, %v636
        %v638 = vld [vmem:[%s8] sm:$0xff]
        %v639 = vld [vmem:[%s8 + $0x8] sm:$0xff]
        %v640 = vld [vmem:[%s8 + $0x10] sm:$0xff]
        %v641 = vld [vmem:[%s8 + $0x18] sm:$0xff]
        %v642 = vld [vmem:[%s8 + $0x20] sm:$0xff]
        %v643 = vld [vmem:[%s8 + $0x28] sm:$0xff]
        %v644 = vld [vmem:[%s8 + $0x30] sm:$0xff]
        %v645 = vld [vmem:[%s8 + $0x38] sm:$0xff]
        %v647 = vlaneseq
        %v648 = vshrl.u32 %v647, 7
        %v649 = vsub.s32 0, %v648
        %v650 = vrot.slane %v430, %v649
        %vm652 = vcmask 523264
        %v654 = vsel %vm652, %v637, 0
        %656 = vmatprep.subr.mxu0 0.0
        %657 = vmatpush1.msra.mxu0 %v638
        %658 = vmatprep.subr.mxu0 0.0
        %659 = vmatpush1.msra.mxu0 %v639
        %660 = vmatprep.subr.mxu0 0.0
        %661 = vmatpush1.msra.mxu0 %v640
        %662 = vmatprep.subr.mxu0 0.0
        %663 = vmatpush1.msra.mxu0 %v641
        %664 = vmatprep.subr.mxu0 0.0
        %665 = vmatpush1.msra.mxu0 %v642
        %666 = vmatprep.subr.mxu0 0.0
        %667 = vmatpush1.msra.mxu0 %v643
        %668 = vmatprep.subr.mxu0 0.0
        %669 = vmatpush1.msra.mxu0 %v644
        %670 = vmatprep.subr.mxu0 0.0
        %671 = vmatpush1.msra.mxu0 %v645
        %672 = vmatprep.subr.mxu0 0.0
        %673 = vmatpush1.msra.mxu0 0.0
        %674 = vmatprep.subr.mxu0 0.0
        %675 = vmatpush1.msra.mxu0 0.0
        %676 = vmatprep.subr.mxu0 0.0
        %677 = vmatpush1.msra.mxu0 0.0
        %678 = vmatprep.subr.mxu0 0.0
        %679 = vmatpush1.msra.mxu0 0.0
        %680 = vmatprep.subr.mxu0 0.0
        %681 = vmatpush1.msra.mxu0 0.0
        %682 = vmatprep.subr.mxu0 0.0
        %683 = vmatpush1.msra.mxu0 0.0
        %684 = vmatprep.subr.mxu0 0.0
        %685 = vmatpush1.msra.mxu0 0.0
        %686 = vmatprep.subr.mxu0 0.0
        %687 = vmatpush1.msra.mxu0 0.0
        %688 = vmatprep.subr.mxu0 0.0
        %689 = vmatpush1.msra.mxu0 0.0
        %690 = vmatprep.subr.mxu0 0.0
        %691 = vmatpush1.msra.mxu0 0.0
        %692 = vmatprep.subr.mxu0 0.0
        %693 = vmatpush1.msra.mxu0 0.0
        %694 = vmatprep.subr.mxu0 0.0
        %695 = vmatpush1.msra.mxu0 0.0
        %696 = vmatprep.subr.mxu0 0.0
        %697 = vmatpush1.msra.mxu0 0.0
        %698 = vmatprep.subr.mxu0 0.0
        %699 = vmatpush1.msra.mxu0 0.0
        %700 = vmatprep.subr.mxu0 0.0
        %701 = vmatpush1.msra.mxu0 0.0
        %702 = vmatprep.subr.mxu0 0.0
        %703 = vmatpush1.msra.mxu0 0.0
        %704 = vmatprep.subr.mxu0 0.0
        %705 = vmatpush1.msra.mxu0 0.0
        %706 = vmatprep.subr.mxu0 0.0
        %707 = vmatpush1.msra.mxu0 0.0
        %708 = vmatprep.subr.mxu0 0.0
        %709 = vmatpush1.msra.mxu0 0.0
        %710 = vmatprep.subr.mxu0 0.0
        %711 = vmatpush1.msra.mxu0 0.0
        %712 = vmatprep.subr.mxu0 0.0
        %713 = vmatpush1.msra.mxu0 0.0
        %714 = vmatprep.subr.mxu0 0.0
        %715 = vmatpush1.msra.mxu0 0.0
        %716 = vmatprep.subr.mxu0 0.0
        %717 = vmatpush1.msra.mxu0 0.0
        %718 = vmatprep.subr.mxu0 0.0
        %719 = vmatpush1.msra.mxu0 0.0
        %720 = vmatprep.mubr.f32.mxu0 0.0
        %721 = vmatmul.mubr.f32.gmra.mrb[0].mxu0 %v654
        %v722 = vpop.f32.mrb[0].mxu0
        %v723 = vadd.f32 %v650, %v722
        %v724 = vpop.f32.mrb[0].mxu0
        %725 = vdwg.mxu0
        %v726 = vadd.f32 %v723, %v549
        %v727 = vsel %vm445, %v726, 0.0
        %728 = vadd.xlane.f32.xlu0 %v727
        %v729 = vpop.xlane.xlu0 %728
        %v730 = vmul.f32 %v729, 0.03125
        %v731 = vmul.f32 %v726, %v726
        %v732 = vsel %vm445, %v731, 0.0
        %733 = vadd.xlane.f32.xlu0 %v732
        %v734 = vpop.xlane.xlu0 %733
        %v735 = vmul.f32 %v734, 0.03125
        %v736 = vmul.f32 %v730, %v730
        %v737 = vsub.f32 %v735, %v736
        %v738 = vmax.f32 %v737, 0.0
        %v739 = vadd.f32 %v738, 1e-12
        %v740 = vrsqrt.pop %v739
        %v741 = vsub.f32 %v726, %v730
        %v742 = vmul.f32 %v741, %v740
        %v744 = vlaneseq
        %v745 = vshrl.u32 %v744, 7
        %v746 = vsub.s32 0, %v745
        %v747 = vrot.slane %v431, %v746
        %v749 = vmul.f32 %v742, %v747
        %v751 = vlaneseq
        %v752 = vshrl.u32 %v751, 7
        %v753 = vsub.s32 0, %v752
        %v754 = vrot.slane %v432, %v753
        %v756 = vadd.f32 %v749, %v754
        %757 = vst.msk [vmem:[%s417] sm:$0xff] %vm445, %v756
        %s758 = sand.u32 %s296, 1
        %s759 = scalar_lea.sflag [#allocation3], %s758
        %s760 = sand.u32 %s296, 1
        %s761 = smul.addr %s760, 8
        %s762 = scalar_lea.vmem [#allocation2], %s761
        // Predicated region
        $region69: #{tpu_custom_call.1} parent=67 // pred_check
          %p763 = pneg %p306
        $region70: #{tpu_custom_call.1} parent=67 // pred_check_branch
          %765 = sbr.rel (%p763) target = $region72
        $region71: #{tpu_custom_call.1} parent=67 // pred_region
          %s767 = ssub.s32 128, 128
          %768 = vsyncadd %s759, %s767
          %s769 = smul.addr %s26, 128
          %s770 = scalar_lea.hbm %s12, %s769
          %s772 = sshll.u32 %s762, 4
          %s773 = int_to_ptr.vmem [resolvable:$true] %s772
          %775 = dma.vmem_to_hbm [thread:$0]  %s773, 128, %s770, %s759
        $region72: #{tpu_custom_call.1} parent=67 // pred_fallthru
          _
      $region68: #{tpu_custom_call.1} parent=5 // pred_fallthru
        _
      %p776 = scmp.le.s32.totalorder 2, %s21
      // Predicated region
      $region73: #{tpu_custom_call.1} parent=5 // pred_check
        %p777 = pneg %p776
      $region74: #{tpu_custom_call.1} parent=5 // pred_check_branch
        %779 = sbr.rel (%p777) target = $region76
      $region75: #{tpu_custom_call.1} parent=5 // pred_region
        %s780 = ssub.s32 %s21, 2
        // Predicated region
        $region77: #{tpu_custom_call.1} parent=75 // pred_check
          %p781 = pneg %p312
        $region78: #{tpu_custom_call.1} parent=75 // pred_check_branch
          %783 = sbr.rel (%p781) target = $region80
        $region79: #{tpu_custom_call.1} parent=75 // pred_region
          %s784 = sand.u32 %s297, 1
          %s785 = scalar_lea.sflag [#allocation3], %s784
          %s786 = sand.u32 %s297, 1
          %s787 = smul.addr %s786, 8
          %s788 = scalar_lea.vmem [#allocation2], %s787
          %789 = dma.done %s785, 128
        $region80: #{tpu_custom_call.1} parent=75 // pred_fallthru
          _
      $region76: #{tpu_custom_call.1} parent=5 // pred_fallthru
        _
    $region6: #{tpu_custom_call.1} parent=1 // loop_footer
      %s25 = sadd.s32 1, %s21
    $region7: #{tpu_custom_call.1} parent=1 // loop_footer_branch
      %20 = sbr.rel target = $region3
    $region8: #{tpu_custom_call.1} parent=1 // loop_exit
      _
    %790 = vsyncpa [#allocation3], 1
    %s791 = scalar_lea.sflag [#allocation3], 1
    %792 = vsyncpa %s791, 1

</llo_original>
